<compile_context>
chip_gen: v7x
topology: tpu7x:2x2x1
jax: 0.10.0
libtpu: 0.0.40
codegen_flags: <defaults>
</compile_context>

<pallas_src>
import functools
import math

import jax
import jax.numpy as jnp
import numpy as np
from jax.experimental import pallas as pl
from jax.experimental.pallas import tpu as pltpu


def episodic_memory_kernel(fq_ref, w_ref, out_ref, *, hops):
    """Fused EpisodicMemory forward (attention + AttentionGRU + next_mem).

    fq_ref : (S+2, B, H) f32.  Rows [0:S] = facts (seq-major),
             row S = question, row S+1 = initial memory.
    w_ref  : (11H+5, H) f32 packed weight slab (see pack_params()).
    out_ref: (B, H) f32, the memory after `hops` episodes.
    """
    f32 = jnp.float32
    Sp2, B, H = fq_ref.shape
    S = Sp2 - 2

    fq = fq_ref[...]
    facts = fq[0:S]                      # (S, B, H)
    q = fq[S]                            # (B, H)
    m = fq[S + 1]                        # (B, H)
    qb = q[None]                         # (1, B, H)

    w = w_ref[...]                       # (11H+5, H), loaded once
    wz1 = w[0:4 * H]                     # z1^T                   (4H, H)
    wnm_m = w[4 * H:5 * H]               # next_mem^T (m rows)    (H, H)
    wnm_c = w[5 * H:6 * H]               # next_mem^T (c rows)    (H, H)
    wnm_q = w[6 * H:7 * H]               # next_mem^T (q rows)    (H, H)
    w_r = w[7 * H:8 * H]                 # Wr^T                   (H, H)
    w_w = w[8 * H:9 * H]                 # W^T                    (H, H)
    w_ur = w[9 * H:10 * H]               # Ur^T                   (H, H)
    w_u = w[10 * H:11 * H]               # U^T                    (H, H)
    bias = w[11 * H:11 * H + 5]          # (5, H)
    bz1 = bias[0:1]
    bur = bias[1:2]
    bw = bias[2:3]
    bnm = bias[3:4]
    wz2 = bias[4:5]                      # z2 weight row (1, H)
    # z2 bias intentionally dropped: a constant logit shift is a no-op under
    # the softmax over the sequence axis.

    facts_flat = facts.reshape(S * B, H)

    # ---- Hop-invariant precomputes (depend only on facts / q) --------------
    # AGRU input-path projections with the Ur/W biases folded in once.
    xr_all = (jnp.dot(facts_flat, w_r, preferred_element_type=f32)
              + bur).reshape(S, B, H)
    xw_all = (jnp.dot(facts_flat, w_w, preferred_element_type=f32)
              + bw).reshape(S, B, H)
    # q-dependent interaction features.
    fq_prod = facts * qb
    fq_abs = jnp.abs(facts - qb)
    # q part of next_mem (+ bias).
    nm_q = jnp.dot(q, wnm_q, preferred_element_type=f32) + bnm

    # ---- Episode (hop) loop: only m evolves ---------------------------------
    for _ in range(hops):
        mb = m[None]                     # (1, B, H)

        # Attention gate: single K=4H matmul; H->1 done as a lane reduction.
        z = jnp.concatenate(
            [fq_prod, facts * mb, fq_abs, jnp.abs(facts - mb)],
            axis=-1).reshape(S * B, 4 * H)
        h1 = jnp.tanh(jnp.dot(z, wz1, preferred_element_type=f32) + bz1)
        logits = jnp.sum(h1.reshape(S, B, H) * wz2[None], axis=-1,
                         keepdims=True)                           # (S, B, 1)
        logits = logits - jnp.max(logits, axis=0, keepdims=True)
        e = jnp.exp(logits)
        g = e / jnp.sum(e, axis=0, keepdims=True)                 # (S, B, 1)

        # Broadcast the gates once, outside the serial recurrence.
        gb = jnp.broadcast_to(g, (S, B, H))
        one_minus_gb = 1.0 - gb

        # m part of next_mem overlaps with the recurrence below.
        nm_m = jnp.dot(m, wnm_m, preferred_element_type=f32)

        # AttentionGRU recurrence.  Only two tiny lane-aligned (H,H) matmuls
        # and a handful of VPU ops per step remain on the serial chain.
        # TODO(synk): switch the static unroll to lax.fori_loop for large S.
        c = jnp.zeros((B, H), f32)
        for sid in range(S):
            cr = jnp.dot(c, w_ur, preferred_element_type=f32)
            cu = jnp.dot(c, w_u, preferred_element_type=f32)
            r = jax.nn.sigmoid(xr_all[sid] + cr)
            h_t = jnp.tanh(xw_all[sid] + r * cu)
            c = gb[sid] * h_t + one_minus_gb[sid] * c

        # next_mem: relu(m@Wm + c@Wc + q@Wq + b); q part precomputed.
        m = jnp.maximum(
            nm_q + nm_m + jnp.dot(c, wnm_c, preferred_element_type=f32), 0.0)

    out_ref[...] = m.astype(out_ref.dtype)


def pack_params(params):
    """One-time packing of every weight/bias into a single (11H+5, H) slab."""
    H = params["z1_b"].shape[0]
    return jnp.concatenate([
        params["z1_w"].T,                                  # (4H, H)
        params["nm_w"].T,                                  # (3H, H) [m|c|q] rows
        params["Wr"].T, params["W_w"].T,                   # (H, H) each
        params["Ur_w"].T, params["U"].T,                   # (H, H) each
        jnp.stack([params["z1_b"], params["Ur_b"], params["W_b"],
                   params["nm_b"], params["z2_w"].reshape(H)]),   # (5, H)
    ], axis=0).astype(jnp.float32)


def episodic_memory_forward(facts, questions, prev_memory, wslab, *, hops=1):
    """facts (B,S,H); questions/prev_memory (B,1,H); wslab = pack_params(...).
    Returns the memory after `hops` episodes, shape (B, 1, H)."""
    fq = jnp.concatenate(
        [jnp.transpose(facts, (1, 0, 2)),            # (S, B, H) seq-major
         jnp.transpose(questions, (1, 0, 2)),        # (1, B, H)
         jnp.transpose(prev_memory, (1, 0, 2))],     # (1, B, H)
        axis=0)                                      # (S+2, B, H)
    B, _, H = facts.shape

    vmem = pl.BlockSpec(memory_space=pltpu.MemorySpace.VMEM)
    out = pl.pallas_call(
        functools.partial(episodic_memory_kernel, hops=hops),
        out_shape=jax.ShapeDtypeStruct((B, H), jnp.float32),
        in_specs=[vmem, vmem],
        out_specs=vmem,
    )(fq, wslab)
    return out[:, None, :]


def episodic_memory_reference(facts, questions, prev_memory, params):
    """Pure-JAX reference mirroring the PyTorch forward exactly."""
    B, S, H = facts.shape
    z = jnp.concatenate(
        [facts * questions, facts * prev_memory,
         jnp.abs(facts - questions), jnp.abs(facts - prev_memory)], axis=2)
    z = z.reshape(-1, 4 * H)
    G = jnp.tanh(z @ params["z1_w"].T + params["z1_b"])
    G = G @ params["z2_w"].T + params["z2_b"]
    G = jax.nn.softmax(G.reshape(B, S), axis=1)

    c = jnp.zeros((B, H), jnp.float32)
    for sid in range(S):
        fact = facts[:, sid, :]
        g = G[:, sid][:, None]
        r = jax.nn.sigmoid(fact @ params["Wr"].T + c @ params["Ur_w"].T
                           + params["Ur_b"])
        h = jnp.tanh(fact @ params["W_w"].T + params["W_b"]
                     + r * (c @ params["U"].T))
        c = g * h + (1.0 - g) * c

    concat = jnp.concatenate(
        [prev_memory[:, 0, :], c, questions[:, 0, :]], axis=1)
    nm = jax.nn.relu(concat @ params["nm_w"].T + params["nm_b"])
    return nm[:, None, :]


def init_params(key, hidden_size):
    H = hidden_size
    bound = 1.0 / math.sqrt(H)  # uniform_init_rnn: U(-1/sqrt(H), 1/sqrt(H))
    ks = jax.random.split(key, 12)

    def u(k, shape):
        return jax.random.uniform(k, shape, jnp.float32, -bound, bound)

    return {
        "Wr": u(ks[0], (H, H)),
        "Ur_w": u(ks[1], (H, H)), "Ur_b": u(ks[2], (H,)),
        "W_w": u(ks[3], (H, H)), "W_b": u(ks[4], (H,)),
        "U": u(ks[5], (H, H)),
        "z1_w": u(ks[6], (H, 4 * H)), "z1_b": u(ks[7], (H,)),
        "z2_w": u(ks[8], (1, H)), "z2_b": u(ks[9], (1,)),
        "nm_w": u(ks[10], (H, 3 * H)), "nm_b": u(ks[11], (H,)),
    }


if __name__ == "__main__":
    B, S, H = 2, 8, 32

    key = jax.random.PRNGKey(0)
    kp, kf, kq, km = jax.random.split(key, 4)
    params = init_params(kp, H)
    wslab = pack_params(params)                      # packed once, reused

    facts = jax.random.normal(kf, (B, S, H), jnp.float32)
    questions = jax.random.normal(kq, (B, 1, H), jnp.float32)
    prev_memory = jax.random.normal(km, (B, 1, H), jnp.float32)

    fwd = jax.jit(episodic_memory_forward, static_argnames=("hops",))

    # Single hop: exact module semantics.
    out = jax.block_until_ready(fwd(facts, questions, prev_memory, wslab))
    ref = jax.block_until_ready(
        episodic_memory_reference(facts, questions, prev_memory, params))
    assert out.shape == (B, 1, H), out.shape
    np.testing.assert_allclose(np.asarray(out), np.asarray(ref),
                               rtol=1e-3, atol=1e-3)

    # Fused 3-hop episode loop inside one pallas_call (the top perf lever).
    out3 = jax.block_until_ready(
        fwd(facts, questions, prev_memory, wslab, hops=3))
    ref3 = prev_memory
    for _ in range(3):
        ref3 = episodic_memory_reference(facts, questions, ref3, params)
    np.testing.assert_allclose(np.asarray(out3),
                               np.asarray(jax.block_until_ready(ref3)),
                               rtol=1e-3, atol=1e-3)

    print("KERNEL_OK")
</pallas_src>

<mosaic_0001>
module attributes {stable_mosaic.version = 11 : i64} {
  func.func @episodic_memory_kernel(%arg0: memref<10x2x32xf32, #tpu.memory_space<vmem>>, %arg1: memref<357x32xf32, #tpu.memory_space<vmem>>, %arg2: memref<2x32xf32, #tpu.memory_space<vmem>>) attributes {dimension_semantics = [], scalar_prefetch = 0 : i64, scratch_operands = 0 : i64, tpu.core_type = #tpu.core_type<tc>} {
    %c0 = arith.constant 0 : index
    %c0_0 = arith.constant 0 : index
    %c0_1 = arith.constant 0 : index
    %0 = vector.load %arg0[%c0, %c0_0, %c0_1] : memref<10x2x32xf32, #tpu.memory_space<vmem>>, vector<10x2x32xf32>
    %1 = vector.extract_strided_slice %0 {offsets = [0, 0, 0], sizes = [8, 2, 32], strides = [1, 1, 1]} : vector<10x2x32xf32> to vector<8x2x32xf32>
    %2 = vector.extract_strided_slice %0 {offsets = [8, 0, 0], sizes = [1, 2, 32], strides = [1, 1, 1]} : vector<10x2x32xf32> to vector<1x2x32xf32>
    %3 = vector.shape_cast %2 : vector<1x2x32xf32> to vector<2x32xf32>
    %4 = vector.extract_strided_slice %0 {offsets = [9, 0, 0], sizes = [1, 2, 32], strides = [1, 1, 1]} : vector<10x2x32xf32> to vector<1x2x32xf32>
    %5 = vector.shape_cast %4 : vector<1x2x32xf32> to vector<2x32xf32>
    %6 = vector.shape_cast %3 : vector<2x32xf32> to vector<1x2x32xf32>
    %c0_2 = arith.constant 0 : index
    %c0_3 = arith.constant 0 : index
    %7 = vector.load %arg1[%c0_2, %c0_3] : memref<357x32xf32, #tpu.memory_space<vmem>>, vector<357x32xf32>
    %8 = vector.extract_strided_slice %7 {offsets = [0, 0], sizes = [128, 32], strides = [1, 1]} : vector<357x32xf32> to vector<128x32xf32>
    %9 = vector.extract_strided_slice %7 {offsets = [128, 0], sizes = [32, 32], strides = [1, 1]} : vector<357x32xf32> to vector<32x32xf32>
    %10 = vector.extract_strided_slice %7 {offsets = [160, 0], sizes = [32, 32], strides = [1, 1]} : vector<357x32xf32> to vector<32x32xf32>
    %11 = vector.extract_strided_slice %7 {offsets = [192, 0], sizes = [32, 32], strides = [1, 1]} : vector<357x32xf32> to vector<32x32xf32>
    %12 = vector.extract_strided_slice %7 {offsets = [224, 0], sizes = [32, 32], strides = [1, 1]} : vector<357x32xf32> to vector<32x32xf32>
    %13 = vector.extract_strided_slice %7 {offsets = [256, 0], sizes = [32, 32], strides = [1, 1]} : vector<357x32xf32> to vector<32x32xf32>
    %14 = vector.extract_strided_slice %7 {offsets = [288, 0], sizes = [32, 32], strides = [1, 1]} : vector<357x32xf32> to vector<32x32xf32>
    %15 = vector.extract_strided_slice %7 {offsets = [320, 0], sizes = [32, 32], strides = [1, 1]} : vector<357x32xf32> to vector<32x32xf32>
    %16 = vector.extract_strided_slice %7 {offsets = [352, 0], sizes = [5, 32], strides = [1, 1]} : vector<357x32xf32> to vector<5x32xf32>
    %17 = vector.extract_strided_slice %16 {offsets = [0, 0], sizes = [1, 32], strides = [1, 1]} : vector<5x32xf32> to vector<1x32xf32>
    %18 = vector.extract_strided_slice %16 {offsets = [1, 0], sizes = [1, 32], strides = [1, 1]} : vector<5x32xf32> to vector<1x32xf32>
    %19 = vector.extract_strided_slice %16 {offsets = [2, 0], sizes = [1, 32], strides = [1, 1]} : vector<5x32xf32> to vector<1x32xf32>
    %20 = vector.extract_strided_slice %16 {offsets = [3, 0], sizes = [1, 32], strides = [1, 1]} : vector<5x32xf32> to vector<1x32xf32>
    %21 = vector.extract_strided_slice %16 {offsets = [4, 0], sizes = [1, 32], strides = [1, 1]} : vector<5x32xf32> to vector<1x32xf32>
    %22 = vector.shape_cast %1 : vector<8x2x32xf32> to vector<16x32xf32>
    %cst = arith.constant dense<0.000000e+00> : vector<16x32xf32>
    %23 = tpu.matmul %22, %12, %cst {dimension_numbers = #tpu.dot_dimension_numbers<[1], [0], [0], [1], [0, 0, 1, 1], [], []>} : vector<16x32xf32>, vector<32x32xf32>, vector<16x32xf32> -> vector<16x32xf32>
    %24 = vector.broadcast %18 : vector<1x32xf32> to vector<16x32xf32>
    %25 = arith.addf %23, %24 : vector<16x32xf32>
    %26 = vector.shape_cast %25 : vector<16x32xf32> to vector<8x2x32xf32>
    %cst_4 = arith.constant dense<0.000000e+00> : vector<16x32xf32>
    %27 = tpu.matmul %22, %13, %cst_4 {dimension_numbers = #tpu.dot_dimension_numbers<[1], [0], [0], [1], [0, 0, 1, 1], [], []>} : vector<16x32xf32>, vector<32x32xf32>, vector<16x32xf32> -> vector<16x32xf32>
    %28 = vector.broadcast %19 : vector<1x32xf32> to vector<16x32xf32>
    %29 = arith.addf %27, %28 : vector<16x32xf32>
    %30 = vector.shape_cast %29 : vector<16x32xf32> to vector<8x2x32xf32>
    %31 = vector.broadcast %6 : vector<1x2x32xf32> to vector<8x2x32xf32>
    %32 = arith.mulf %1, %31 : vector<8x2x32xf32>
    %33 = vector.broadcast %6 : vector<1x2x32xf32> to vector<8x2x32xf32>
    %34 = arith.subf %1, %33 : vector<8x2x32xf32>
    %35 = math.absf %34 : vector<8x2x32xf32>
    %cst_5 = arith.constant dense<0.000000e+00> : vector<2x32xf32>
    %36 = tpu.matmul %3, %11, %cst_5 {dimension_numbers = #tpu.dot_dimension_numbers<[1], [0], [0], [1], [0, 0, 1, 1], [], []>} : vector<2x32xf32>, vector<32x32xf32>, vector<2x32xf32> -> vector<2x32xf32>
    %37 = vector.broadcast %20 : vector<1x32xf32> to vector<2x32xf32>
    %38 = arith.addf %36, %37 : vector<2x32xf32>
    %39 = vector.shape_cast %5 : vector<2x32xf32> to vector<1x2x32xf32>
    %40 = vector.broadcast %39 : vector<1x2x32xf32> to vector<8x2x32xf32>
    %41 = arith.mulf %1, %40 : vector<8x2x32xf32>
    %42 = vector.broadcast %39 : vector<1x2x32xf32> to vector<8x2x32xf32>
    %43 = arith.subf %1, %42 : vector<8x2x32xf32>
    %44 = math.absf %43 : vector<8x2x32xf32>
    %45 = tpu.concatenate %32, %41, %35, %44 in 2 : vector<8x2x32xf32>, vector<8x2x32xf32>, vector<8x2x32xf32>, vector<8x2x32xf32> -> vector<8x2x128xf32>
    %46 = vector.shape_cast %45 : vector<8x2x128xf32> to vector<16x128xf32>
    %cst_6 = arith.constant dense<0.000000e+00> : vector<16x32xf32>
    %47 = tpu.matmul %46, %8, %cst_6 {dimension_numbers = #tpu.dot_dimension_numbers<[1], [0], [0], [1], [0, 0, 1, 1], [], []>} : vector<16x128xf32>, vector<128x32xf32>, vector<16x32xf32> -> vector<16x32xf32>
    %48 = vector.broadcast %17 : vector<1x32xf32> to vector<16x32xf32>
    %49 = arith.addf %47, %48 : vector<16x32xf32>
    %50 = math.tanh %49 : vector<16x32xf32>
    %51 = vector.shape_cast %50 : vector<16x32xf32> to vector<8x2x32xf32>
    %52 = vector.shape_cast %21 : vector<1x32xf32> to vector<1x1x32xf32>
    %53 = vector.broadcast %52 : vector<1x1x32xf32> to vector<8x2x32xf32>
    %54 = arith.mulf %51, %53 : vector<8x2x32xf32>
    %cst_7 = arith.constant dense<0.000000e+00> : vector<8x2xf32>
    %55 = vector.multi_reduction <add>, %54, %cst_7 [2] : vector<8x2x32xf32> to vector<8x2xf32>
    %56 = vector.shape_cast %55 : vector<8x2xf32> to vector<8x2x1xf32>
    %cst_8 = arith.constant dense<0xFF800000> : vector<2x1xf32>
    %57 = vector.multi_reduction <maximumf>, %56, %cst_8 [0] : vector<8x2x1xf32> to vector<2x1xf32>
    %58 = vector.shape_cast %57 : vector<2x1xf32> to vector<1x2x1xf32>
    %59 = vector.broadcast %58 : vector<1x2x1xf32> to vector<8x2x1xf32>
    %60 = arith.subf %56, %59 : vector<8x2x1xf32>
    %61 = math.exp %60 : vector<8x2x1xf32>
    %cst_9 = arith.constant dense<0.000000e+00> : vector<2x1xf32>
    %62 = vector.multi_reduction <add>, %61, %cst_9 [0] : vector<8x2x1xf32> to vector<2x1xf32>
    %63 = vector.shape_cast %62 : vector<2x1xf32> to vector<1x2x1xf32>
    %64 = vector.broadcast %63 : vector<1x2x1xf32> to vector<8x2x1xf32>
    %65 = arith.divf %61, %64 : vector<8x2x1xf32>
    %66 = vector.shape_cast %65 : vector<8x2x1xf32> to vector<8x2x1xf32>
    %67 = vector.broadcast %66 : vector<8x2x1xf32> to vector<8x2x32xf32>
    %cst_10 = arith.constant 1.000000e+00 : f32
    %68 = vector.broadcast %cst_10 : f32 to vector<8x2x32xf32>
    %69 = arith.subf %68, %67 : vector<8x2x32xf32>
    %cst_11 = arith.constant dense<0.000000e+00> : vector<2x32xf32>
    %70 = tpu.matmul %5, %9, %cst_11 {dimension_numbers = #tpu.dot_dimension_numbers<[1], [0], [0], [1], [0, 0, 1, 1], [], []>} : vector<2x32xf32>, vector<32x32xf32>, vector<2x32xf32> -> vector<2x32xf32>
    %cst_12 = arith.constant 0.000000e+00 : f32
    %71 = vector.broadcast %cst_12 : f32 to vector<2x32xf32>
    %cst_13 = arith.constant dense<0.000000e+00> : vector<2x32xf32>
    %72 = tpu.matmul %71, %14, %cst_13 {dimension_numbers = #tpu.dot_dimension_numbers<[1], [0], [0], [1], [0, 0, 1, 1], [], []>} : vector<2x32xf32>, vector<32x32xf32>, vector<2x32xf32> -> vector<2x32xf32>
    %cst_14 = arith.constant dense<0.000000e+00> : vector<2x32xf32>
    %73 = tpu.matmul %71, %15, %cst_14 {dimension_numbers = #tpu.dot_dimension_numbers<[1], [0], [0], [1], [0, 0, 1, 1], [], []>} : vector<2x32xf32>, vector<32x32xf32>, vector<2x32xf32> -> vector<2x32xf32>
    %74 = vector.extract_strided_slice %26 {offsets = [0, 0, 0], sizes = [1, 2, 32], strides = [1, 1, 1]} : vector<8x2x32xf32> to vector<1x2x32xf32>
    %75 = vector.shape_cast %74 : vector<1x2x32xf32> to vector<2x32xf32>
    %76 = arith.addf %75, %72 : vector<2x32xf32>
    %77 = arith.negf %76 : vector<2x32xf32>
    %78 = math.exp %77 : vector<2x32xf32>
    %cst_15 = arith.constant 1.000000e+00 : f32
    %79 = vector.broadcast %cst_15 : f32 to vector<2x32xf32>
    %80 = arith.addf %79, %78 : vector<2x32xf32>
    %81 = arith.divf %79, %80 : vector<2x32xf32>
    %82 = vector.extract_strided_slice %30 {offsets = [0, 0, 0], sizes = [1, 2, 32], strides = [1, 1, 1]} : vector<8x2x32xf32> to vector<1x2x32xf32>
    %83 = vector.shape_cast %82 : vector<1x2x32xf32> to vector<2x32xf32>
    %84 = arith.mulf %81, %73 : vector<2x32xf32>
    %85 = arith.addf %83, %84 : vector<2x32xf32>
    %86 = math.tanh %85 : vector<2x32xf32>
    %87 = vector.extract_strided_slice %67 {offsets = [0, 0, 0], sizes = [1, 2, 32], strides = [1, 1, 1]} : vector<8x2x32xf32> to vector<1x2x32xf32>
    %88 = vector.shape_cast %87 : vector<1x2x32xf32> to vector<2x32xf32>
    %89 = arith.mulf %88, %86 : vector<2x32xf32>
    %90 = vector.extract_strided_slice %69 {offsets = [0, 0, 0], sizes = [1, 2, 32], strides = [1, 1, 1]} : vector<8x2x32xf32> to vector<1x2x32xf32>
    %91 = vector.shape_cast %90 : vector<1x2x32xf32> to vector<2x32xf32>
    %92 = arith.mulf %91, %71 : vector<2x32xf32>
    %93 = arith.addf %89, %92 : vector<2x32xf32>
    %cst_16 = arith.constant dense<0.000000e+00> : vector<2x32xf32>
    %94 = tpu.matmul %93, %14, %cst_16 {dimension_numbers = #tpu.dot_dimension_numbers<[1], [0], [0], [1], [0, 0, 1, 1], [], []>} : vector<2x32xf32>, vector<32x32xf32>, vector<2x32xf32> -> vector<2x32xf32>
    %cst_17 = arith.constant dense<0.000000e+00> : vector<2x32xf32>
    %95 = tpu.matmul %93, %15, %cst_17 {dimension_numbers = #tpu.dot_dimension_numbers<[1], [0], [0], [1], [0, 0, 1, 1], [], []>} : vector<2x32xf32>, vector<32x32xf32>, vector<2x32xf32> -> vector<2x32xf32>
    %96 = vector.extract_strided_slice %26 {offsets = [1, 0, 0], sizes = [1, 2, 32], strides = [1, 1, 1]} : vector<8x2x32xf32> to vector<1x2x32xf32>
    %97 = vector.shape_cast %96 : vector<1x2x32xf32> to vector<2x32xf32>
    %98 = arith.addf %97, %94 : vector<2x32xf32>
    %99 = arith.negf %98 : vector<2x32xf32>
    %100 = math.exp %99 : vector<2x32xf32>
    %cst_18 = arith.constant 1.000000e+00 : f32
    %101 = vector.broadcast %cst_18 : f32 to vector<2x32xf32>
    %102 = arith.addf %101, %100 : vector<2x32xf32>
    %103 = arith.divf %101, %102 : vector<2x32xf32>
    %104 = vector.extract_strided_slice %30 {offsets = [1, 0, 0], sizes = [1, 2, 32], strides = [1, 1, 1]} : vector<8x2x32xf32> to vector<1x2x32xf32>
    %105 = vector.shape_cast %104 : vector<1x2x32xf32> to vector<2x32xf32>
    %106 = arith.mulf %103, %95 : vector<2x32xf32>
    %107 = arith.addf %105, %106 : vector<2x32xf32>
    %108 = math.tanh %107 : vector<2x32xf32>
    %109 = vector.extract_strided_slice %67 {offsets = [1, 0, 0], sizes = [1, 2, 32], strides = [1, 1, 1]} : vector<8x2x32xf32> to vector<1x2x32xf32>
    %110 = vector.shape_cast %109 : vector<1x2x32xf32> to vector<2x32xf32>
    %111 = arith.mulf %110, %108 : vector<2x32xf32>
    %112 = vector.extract_strided_slice %69 {offsets = [1, 0, 0], sizes = [1, 2, 32], strides = [1, 1, 1]} : vector<8x2x32xf32> to vector<1x2x32xf32>
    %113 = vector.shape_cast %112 : vector<1x2x32xf32> to vector<2x32xf32>
    %114 = arith.mulf %113, %93 : vector<2x32xf32>
    %115 = arith.addf %111, %114 : vector<2x32xf32>
    %cst_19 = arith.constant dense<0.000000e+00> : vector<2x32xf32>
    %116 = tpu.matmul %115, %14, %cst_19 {dimension_numbers = #tpu.dot_dimension_numbers<[1], [0], [0], [1], [0, 0, 1, 1], [], []>} : vector<2x32xf32>, vector<32x32xf32>, vector<2x32xf32> -> vector<2x32xf32>
    %cst_20 = arith.constant dense<0.000000e+00> : vector<2x32xf32>
    %117 = tpu.matmul %115, %15, %cst_20 {dimension_numbers = #tpu.dot_dimension_numbers<[1], [0], [0], [1], [0, 0, 1, 1], [], []>} : vector<2x32xf32>, vector<32x32xf32>, vector<2x32xf32> -> vector<2x32xf32>
    %118 = vector.extract_strided_slice %26 {offsets = [2, 0, 0], sizes = [1, 2, 32], strides = [1, 1, 1]} : vector<8x2x32xf32> to vector<1x2x32xf32>
    %119 = vector.shape_cast %118 : vector<1x2x32xf32> to vector<2x32xf32>
    %120 = arith.addf %119, %116 : vector<2x32xf32>
    %121 = arith.negf %120 : vector<2x32xf32>
    %122 = math.exp %121 : vector<2x32xf32>
    %cst_21 = arith.constant 1.000000e+00 : f32
    %123 = vector.broadcast %cst_21 : f32 to vector<2x32xf32>
    %124 = arith.addf %123, %122 : vector<2x32xf32>
    %125 = arith.divf %123, %124 : vector<2x32xf32>
    %126 = vector.extract_strided_slice %30 {offsets = [2, 0, 0], sizes = [1, 2, 32], strides = [1, 1, 1]} : vector<8x2x32xf32> to vector<1x2x32xf32>
    %127 = vector.shape_cast %126 : vector<1x2x32xf32> to vector<2x32xf32>
    %128 = arith.mulf %125, %117 : vector<2x32xf32>
    %129 = arith.addf %127, %128 : vector<2x32xf32>
    %130 = math.tanh %129 : vector<2x32xf32>
    %131 = vector.extract_strided_slice %67 {offsets = [2, 0, 0], sizes = [1, 2, 32], strides = [1, 1, 1]} : vector<8x2x32xf32> to vector<1x2x32xf32>
    %132 = vector.shape_cast %131 : vector<1x2x32xf32> to vector<2x32xf32>
    %133 = arith.mulf %132, %130 : vector<2x32xf32>
    %134 = vector.extract_strided_slice %69 {offsets = [2, 0, 0], sizes = [1, 2, 32], strides = [1, 1, 1]} : vector<8x2x32xf32> to vector<1x2x32xf32>
    %135 = vector.shape_cast %134 : vector<1x2x32xf32> to vector<2x32xf32>
    %136 = arith.mulf %135, %115 : vector<2x32xf32>
    %137 = arith.addf %133, %136 : vector<2x32xf32>
    %cst_22 = arith.constant dense<0.000000e+00> : vector<2x32xf32>
    %138 = tpu.matmul %137, %14, %cst_22 {dimension_numbers = #tpu.dot_dimension_numbers<[1], [0], [0], [1], [0, 0, 1, 1], [], []>} : vector<2x32xf32>, vector<32x32xf32>, vector<2x32xf32> -> vector<2x32xf32>
    %cst_23 = arith.constant dense<0.000000e+00> : vector<2x32xf32>
    %139 = tpu.matmul %137, %15, %cst_23 {dimension_numbers = #tpu.dot_dimension_numbers<[1], [0], [0], [1], [0, 0, 1, 1], [], []>} : vector<2x32xf32>, vector<32x32xf32>, vector<2x32xf32> -> vector<2x32xf32>
    %140 = vector.extract_strided_slice %26 {offsets = [3, 0, 0], sizes = [1, 2, 32], strides = [1, 1, 1]} : vector<8x2x32xf32> to vector<1x2x32xf32>
    %141 = vector.shape_cast %140 : vector<1x2x32xf32> to vector<2x32xf32>
    %142 = arith.addf %141, %138 : vector<2x32xf32>
    %143 = arith.negf %142 : vector<2x32xf32>
    %144 = math.exp %143 : vector<2x32xf32>
    %cst_24 = arith.constant 1.000000e+00 : f32
    %145 = vector.broadcast %cst_24 : f32 to vector<2x32xf32>
    %146 = arith.addf %145, %144 : vector<2x32xf32>
    %147 = arith.divf %145, %146 : vector<2x32xf32>
    %148 = vector.extract_strided_slice %30 {offsets = [3, 0, 0], sizes = [1, 2, 32], strides = [1, 1, 1]} : vector<8x2x32xf32> to vector<1x2x32xf32>
    %149 = vector.shape_cast %148 : vector<1x2x32xf32> to vector<2x32xf32>
    %150 = arith.mulf %147, %139 : vector<2x32xf32>
    %151 = arith.addf %149, %150 : vector<2x32xf32>
    %152 = math.tanh %151 : vector<2x32xf32>
    %153 = vector.extract_strided_slice %67 {offsets = [3, 0, 0], sizes = [1, 2, 32], strides = [1, 1, 1]} : vector<8x2x32xf32> to vector<1x2x32xf32>
    %154 = vector.shape_cast %153 : vector<1x2x32xf32> to vector<2x32xf32>
    %155 = arith.mulf %154, %152 : vector<2x32xf32>
    %156 = vector.extract_strided_slice %69 {offsets = [3, 0, 0], sizes = [1, 2, 32], strides = [1, 1, 1]} : vector<8x2x32xf32> to vector<1x2x32xf32>
    %157 = vector.shape_cast %156 : vector<1x2x32xf32> to vector<2x32xf32>
    %158 = arith.mulf %157, %137 : vector<2x32xf32>
    %159 = arith.addf %155, %158 : vector<2x32xf32>
    %cst_25 = arith.constant dense<0.000000e+00> : vector<2x32xf32>
    %160 = tpu.matmul %159, %14, %cst_25 {dimension_numbers = #tpu.dot_dimension_numbers<[1], [0], [0], [1], [0, 0, 1, 1], [], []>} : vector<2x32xf32>, vector<32x32xf32>, vector<2x32xf32> -> vector<2x32xf32>
    %cst_26 = arith.constant dense<0.000000e+00> : vector<2x32xf32>
    %161 = tpu.matmul %159, %15, %cst_26 {dimension_numbers = #tpu.dot_dimension_numbers<[1], [0], [0], [1], [0, 0, 1, 1], [], []>} : vector<2x32xf32>, vector<32x32xf32>, vector<2x32xf32> -> vector<2x32xf32>
    %162 = vector.extract_strided_slice %26 {offsets = [4, 0, 0], sizes = [1, 2, 32], strides = [1, 1, 1]} : vector<8x2x32xf32> to vector<1x2x32xf32>
    %163 = vector.shape_cast %162 : vector<1x2x32xf32> to vector<2x32xf32>
    %164 = arith.addf %163, %160 : vector<2x32xf32>
    %165 = arith.negf %164 : vector<2x32xf32>
    %166 = math.exp %165 : vector<2x32xf32>
    %cst_27 = arith.constant 1.000000e+00 : f32
    %167 = vector.broadcast %cst_27 : f32 to vector<2x32xf32>
    %168 = arith.addf %167, %166 : vector<2x32xf32>
    %169 = arith.divf %167, %168 : vector<2x32xf32>
    %170 = vector.extract_strided_slice %30 {offsets = [4, 0, 0], sizes = [1, 2, 32], strides = [1, 1, 1]} : vector<8x2x32xf32> to vector<1x2x32xf32>
    %171 = vector.shape_cast %170 : vector<1x2x32xf32> to vector<2x32xf32>
    %172 = arith.mulf %169, %161 : vector<2x32xf32>
    %173 = arith.addf %171, %172 : vector<2x32xf32>
    %174 = math.tanh %173 : vector<2x32xf32>
    %175 = vector.extract_strided_slice %67 {offsets = [4, 0, 0], sizes = [1, 2, 32], strides = [1, 1, 1]} : vector<8x2x32xf32> to vector<1x2x32xf32>
    %176 = vector.shape_cast %175 : vector<1x2x32xf32> to vector<2x32xf32>
    %177 = arith.mulf %176, %174 : vector<2x32xf32>
    %178 = vector.extract_strided_slice %69 {offsets = [4, 0, 0], sizes = [1, 2, 32], strides = [1, 1, 1]} : vector<8x2x32xf32> to vector<1x2x32xf32>
    %179 = vector.shape_cast %178 : vector<1x2x32xf32> to vector<2x32xf32>
    %180 = arith.mulf %179, %159 : vector<2x32xf32>
    %181 = arith.addf %177, %180 : vector<2x32xf32>
    %cst_28 = arith.constant dense<0.000000e+00> : vector<2x32xf32>
    %182 = tpu.matmul %181, %14, %cst_28 {dimension_numbers = #tpu.dot_dimension_numbers<[1], [0], [0], [1], [0, 0, 1, 1], [], []>} : vector<2x32xf32>, vector<32x32xf32>, vector<2x32xf32> -> vector<2x32xf32>
    %cst_29 = arith.constant dense<0.000000e+00> : vector<2x32xf32>
    %183 = tpu.matmul %181, %15, %cst_29 {dimension_numbers = #tpu.dot_dimension_numbers<[1], [0], [0], [1], [0, 0, 1, 1], [], []>} : vector<2x32xf32>, vector<32x32xf32>, vector<2x32xf32> -> vector<2x32xf32>
    %184 = vector.extract_strided_slice %26 {offsets = [5, 0, 0], sizes = [1, 2, 32], strides = [1, 1, 1]} : vector<8x2x32xf32> to vector<1x2x32xf32>
    %185 = vector.shape_cast %184 : vector<1x2x32xf32> to vector<2x32xf32>
    %186 = arith.addf %185, %182 : vector<2x32xf32>
    %187 = arith.negf %186 : vector<2x32xf32>
    %188 = math.exp %187 : vector<2x32xf32>
    %cst_30 = arith.constant 1.000000e+00 : f32
    %189 = vector.broadcast %cst_30 : f32 to vector<2x32xf32>
    %190 = arith.addf %189, %188 : vector<2x32xf32>
    %191 = arith.divf %189, %190 : vector<2x32xf32>
    %192 = vector.extract_strided_slice %30 {offsets = [5, 0, 0], sizes = [1, 2, 32], strides = [1, 1, 1]} : vector<8x2x32xf32> to vector<1x2x32xf32>
    %193 = vector.shape_cast %192 : vector<1x2x32xf32> to vector<2x32xf32>
    %194 = arith.mulf %191, %183 : vector<2x32xf32>
    %195 = arith.addf %193, %194 : vector<2x32xf32>
    %196 = math.tanh %195 : vector<2x32xf32>
    %197 = vector.extract_strided_slice %67 {offsets = [5, 0, 0], sizes = [1, 2, 32], strides = [1, 1, 1]} : vector<8x2x32xf32> to vector<1x2x32xf32>
    %198 = vector.shape_cast %197 : vector<1x2x32xf32> to vector<2x32xf32>
    %199 = arith.mulf %198, %196 : vector<2x32xf32>
    %200 = vector.extract_strided_slice %69 {offsets = [5, 0, 0], sizes = [1, 2, 32], strides = [1, 1, 1]} : vector<8x2x32xf32> to vector<1x2x32xf32>
    %201 = vector.shape_cast %200 : vector<1x2x32xf32> to vector<2x32xf32>
    %202 = arith.mulf %201, %181 : vector<2x32xf32>
    %203 = arith.addf %199, %202 : vector<2x32xf32>
    %cst_31 = arith.constant dense<0.000000e+00> : vector<2x32xf32>
    %204 = tpu.matmul %203, %14, %cst_31 {dimension_numbers = #tpu.dot_dimension_numbers<[1], [0], [0], [1], [0, 0, 1, 1], [], []>} : vector<2x32xf32>, vector<32x32xf32>, vector<2x32xf32> -> vector<2x32xf32>
    %cst_32 = arith.constant dense<0.000000e+00> : vector<2x32xf32>
    %205 = tpu.matmul %203, %15, %cst_32 {dimension_numbers = #tpu.dot_dimension_numbers<[1], [0], [0], [1], [0, 0, 1, 1], [], []>} : vector<2x32xf32>, vector<32x32xf32>, vector<2x32xf32> -> vector<2x32xf32>
    %206 = vector.extract_strided_slice %26 {offsets = [6, 0, 0], sizes = [1, 2, 32], strides = [1, 1, 1]} : vector<8x2x32xf32> to vector<1x2x32xf32>
    %207 = vector.shape_cast %206 : vector<1x2x32xf32> to vector<2x32xf32>
    %208 = arith.addf %207, %204 : vector<2x32xf32>
    %209 = arith.negf %208 : vector<2x32xf32>
    %210 = math.exp %209 : vector<2x32xf32>
    %cst_33 = arith.constant 1.000000e+00 : f32
    %211 = vector.broadcast %cst_33 : f32 to vector<2x32xf32>
    %212 = arith.addf %211, %210 : vector<2x32xf32>
    %213 = arith.divf %211, %212 : vector<2x32xf32>
    %214 = vector.extract_strided_slice %30 {offsets = [6, 0, 0], sizes = [1, 2, 32], strides = [1, 1, 1]} : vector<8x2x32xf32> to vector<1x2x32xf32>
    %215 = vector.shape_cast %214 : vector<1x2x32xf32> to vector<2x32xf32>
    %216 = arith.mulf %213, %205 : vector<2x32xf32>
    %217 = arith.addf %215, %216 : vector<2x32xf32>
    %218 = math.tanh %217 : vector<2x32xf32>
    %219 = vector.extract_strided_slice %67 {offsets = [6, 0, 0], sizes = [1, 2, 32], strides = [1, 1, 1]} : vector<8x2x32xf32> to vector<1x2x32xf32>
    %220 = vector.shape_cast %219 : vector<1x2x32xf32> to vector<2x32xf32>
    %221 = arith.mulf %220, %218 : vector<2x32xf32>
    %222 = vector.extract_strided_slice %69 {offsets = [6, 0, 0], sizes = [1, 2, 32], strides = [1, 1, 1]} : vector<8x2x32xf32> to vector<1x2x32xf32>
    %223 = vector.shape_cast %222 : vector<1x2x32xf32> to vector<2x32xf32>
    %224 = arith.mulf %223, %203 : vector<2x32xf32>
    %225 = arith.addf %221, %224 : vector<2x32xf32>
    %cst_34 = arith.constant dense<0.000000e+00> : vector<2x32xf32>
    %226 = tpu.matmul %225, %14, %cst_34 {dimension_numbers = #tpu.dot_dimension_numbers<[1], [0], [0], [1], [0, 0, 1, 1], [], []>} : vector<2x32xf32>, vector<32x32xf32>, vector<2x32xf32> -> vector<2x32xf32>
    %cst_35 = arith.constant dense<0.000000e+00> : vector<2x32xf32>
    %227 = tpu.matmul %225, %15, %cst_35 {dimension_numbers = #tpu.dot_dimension_numbers<[1], [0], [0], [1], [0, 0, 1, 1], [], []>} : vector<2x32xf32>, vector<32x32xf32>, vector<2x32xf32> -> vector<2x32xf32>
    %228 = vector.extract_strided_slice %26 {offsets = [7, 0, 0], sizes = [1, 2, 32], strides = [1, 1, 1]} : vector<8x2x32xf32> to vector<1x2x32xf32>
    %229 = vector.shape_cast %228 : vector<1x2x32xf32> to vector<2x32xf32>
    %230 = arith.addf %229, %226 : vector<2x32xf32>
    %231 = arith.negf %230 : vector<2x32xf32>
    %232 = math.exp %231 : vector<2x32xf32>
    %cst_36 = arith.constant 1.000000e+00 : f32
    %233 = vector.broadcast %cst_36 : f32 to vector<2x32xf32>
    %234 = arith.addf %233, %232 : vector<2x32xf32>
    %235 = arith.divf %233, %234 : vector<2x32xf32>
    %236 = vector.extract_strided_slice %30 {offsets = [7, 0, 0], sizes = [1, 2, 32], strides = [1, 1, 1]} : vector<8x2x32xf32> to vector<1x2x32xf32>
    %237 = vector.shape_cast %236 : vector<1x2x32xf32> to vector<2x32xf32>
    %238 = arith.mulf %235, %227 : vector<2x32xf32>
    %239 = arith.addf %237, %238 : vector<2x32xf32>
    %240 = math.tanh %239 : vector<2x32xf32>
    %241 = vector.extract_strided_slice %67 {offsets = [7, 0, 0], sizes = [1, 2, 32], strides = [1, 1, 1]} : vector<8x2x32xf32> to vector<1x2x32xf32>
    %242 = vector.shape_cast %241 : vector<1x2x32xf32> to vector<2x32xf32>
    %243 = arith.mulf %242, %240 : vector<2x32xf32>
    %244 = vector.extract_strided_slice %69 {offsets = [7, 0, 0], sizes = [1, 2, 32], strides = [1, 1, 1]} : vector<8x2x32xf32> to vector<1x2x32xf32>
    %245 = vector.shape_cast %244 : vector<1x2x32xf32> to vector<2x32xf32>
    %246 = arith.mulf %245, %225 : vector<2x32xf32>
    %247 = arith.addf %243, %246 : vector<2x32xf32>
    %248 = arith.addf %38, %70 : vector<2x32xf32>
    %cst_37 = arith.constant dense<0.000000e+00> : vector<2x32xf32>
    %249 = tpu.matmul %247, %10, %cst_37 {dimension_numbers = #tpu.dot_dimension_numbers<[1], [0], [0], [1], [0, 0, 1, 1], [], []>} : vector<2x32xf32>, vector<32x32xf32>, vector<2x32xf32> -> vector<2x32xf32>
    %250 = arith.addf %248, %249 : vector<2x32xf32>
    %cst_38 = arith.constant 0.000000e+00 : f32
    %251 = vector.broadcast %cst_38 : f32 to vector<2x32xf32>
    %252 = arith.maximumf %250, %251 : vector<2x32xf32>
    %c0_39 = arith.constant 0 : index
    %c0_40 = arith.constant 0 : index
    %253 = vector.load %arg2[%c0_39, %c0_40] : memref<2x32xf32, #tpu.memory_space<vmem>>, vector<2x32xf32>
    tpu.vector_store %arg2[%c0_39, %c0_40], %252 {strides = array<i32>} : memref<2x32xf32, #tpu.memory_space<vmem>>, vector<2x32xf32>,
    return
  }
}

</mosaic_0001>

<llo_original>
// kernel: episodic_memory_forward.1
$region0: #{episodic_memory_forward.1}
  #allocation0 [shape = 'u32[]', space=smem, size = 0x4, offset = 0x4, fixed_abs, tag = 'smem constant byte address 0x4 - core index']
  #allocation1 [shape = 'u32[144,128]{1,0:T(1,128)}', space=vmem, size = 0x12000, scoped, tag = 'internal scratch']
  %s0 = inlined_call_operand.vmem [shape: f32[10,2,32], index: 0, kind: input, shape index: {}]
  %s1 = inlined_call_operand.vmem [shape: f32[357,32], index: 1, kind: input, shape index: {}]
  %s2 = inlined_call_operand.hbm [shape: f32[2,32], index: 2, kind: output, shape index: {}]
  %s3 = sld [smem:[#allocation0]]
  $region18: #{episodic_memory_forward.1} parent=0
    _
  %s5 = ssub.s32 1, %s3
  %s6 = scalar_select 0, %s5, %s3
  $region1: #{episodic_memory_forward.1} parent=0
    #allocation2 [shape = 'u8[1024]{0}', space=vmem, size = 0x400, scoped, tag = 'output window, operand 0, single buffered']
    #allocation3 [shape = 's32[1]{0}', space=sflag, size = 0x4, scoped, tag = 'scoped memory for episodic_memory_forward.1']
    %7 = vsyncpa [#allocation3], 0
    // Predicated region
    $region2: #{episodic_memory_forward.1} parent=1 // pred_check
      _
    $region3: #{episodic_memory_forward.1} parent=1 // pred_check_branch
      %9 = sbr.rel (0) target = $region5
    $region4: #{episodic_memory_forward.1} parent=1 // pred_region
      _
    $region5: #{episodic_memory_forward.1} parent=1 // pred_fallthru
      _
    // Predicated region
    $region6: #{episodic_memory_forward.1} parent=1 // pred_check
      _
    $region7: #{episodic_memory_forward.1} parent=1 // pred_check_branch
      %11 = sbr.rel (0) target = $region9
    $region8: #{episodic_memory_forward.1} parent=1 // pred_region
      _
    $region9: #{episodic_memory_forward.1} parent=1 // pred_fallthru
      _
    %v12 = vld [vmem:[%s0] sm:$0x3]
    %v13 = vld [vmem:[%s0 + $0x2] sm:$0x3]
    %v14 = vld [vmem:[%s0 + $0x4] sm:$0x3]
    %v15 = vld [vmem:[%s0 + $0x6] sm:$0x3]
    %v16 = vld [vmem:[%s0 + $0x8] sm:$0x3]
    %v17 = vld [vmem:[%s0 + $0xa] sm:$0x3]
    %v18 = vld [vmem:[%s0 + $0xc] sm:$0x3]
    %v19 = vld [vmem:[%s0 + $0xe] sm:$0x3]
    %v20 = vld [vmem:[%s0 + $0x10] sm:$0x3]
    %v21 = vld [vmem:[%s0 + $0x12] sm:$0x3]
    %v22 = vld [vmem:[%s1] sm:$0xff]
    %v23 = vld [vmem:[%s1 + $0x8] sm:$0xff]
    %v24 = vld [vmem:[%s1 + $0x10] sm:$0xff]
    %v25 = vld [vmem:[%s1 + $0x18] sm:$0xff]
    %v26 = vld [vmem:[%s1 + $0x20] sm:$0xff]
    %v27 = vld [vmem:[%s1 + $0x28] sm:$0xff]
    %v28 = vld [vmem:[%s1 + $0x30] sm:$0xff]
    %v29 = vld [vmem:[%s1 + $0x38] sm:$0xff]
    %v30 = vld [vmem:[%s1 + $0x40] sm:$0xff]
    %v31 = vld [vmem:[%s1 + $0x48] sm:$0xff]
    %v32 = vld [vmem:[%s1 + $0x50] sm:$0xff]
    %v33 = vld [vmem:[%s1 + $0x58] sm:$0xff]
    %v34 = vld [vmem:[%s1 + $0x60] sm:$0xff]
    %v35 = vld [vmem:[%s1 + $0x68] sm:$0xff]
    %v36 = vld [vmem:[%s1 + $0x70] sm:$0xff]
    %v37 = vld [vmem:[%s1 + $0x78] sm:$0xff]
    %v38 = vld [vmem:[%s1 + $0x80] sm:$0xff]
    %v39 = vld [vmem:[%s1 + $0x88] sm:$0xff]
    %v40 = vld [vmem:[%s1 + $0x90] sm:$0xff]
    %v41 = vld [vmem:[%s1 + $0x98] sm:$0xff]
    %v42 = vld [vmem:[%s1 + $0xa0] sm:$0xff]
    %v43 = vld [vmem:[%s1 + $0xa8] sm:$0xff]
    %v44 = vld [vmem:[%s1 + $0xb0] sm:$0xff]
    %v45 = vld [vmem:[%s1 + $0xb8] sm:$0xff]
    %v46 = vld [vmem:[%s1 + $0xc0] sm:$0xff]
    %v47 = vld [vmem:[%s1 + $0xc8] sm:$0xff]
    %v48 = vld [vmem:[%s1 + $0xd0] sm:$0xff]
    %v49 = vld [vmem:[%s1 + $0xd8] sm:$0xff]
    %v50 = vld [vmem:[%s1 + $0xe0] sm:$0xff]
    %v51 = vld [vmem:[%s1 + $0xe8] sm:$0xff]
    %v52 = vld [vmem:[%s1 + $0xf0] sm:$0xff]
    %v53 = vld [vmem:[%s1 + $0xf8] sm:$0xff]
    %v54 = vld [vmem:[%s1 + $0x100] sm:$0xff]
    %v55 = vld [vmem:[%s1 + $0x108] sm:$0xff]
    %v56 = vld [vmem:[%s1 + $0x110] sm:$0xff]
    %v57 = vld [vmem:[%s1 + $0x118] sm:$0xff]
    %v58 = vld [vmem:[%s1 + $0x120] sm:$0xff]
    %v59 = vld [vmem:[%s1 + $0x128] sm:$0xff]
    %v60 = vld [vmem:[%s1 + $0x130] sm:$0xff]
    %v61 = vld [vmem:[%s1 + $0x138] sm:$0xff]
    %v62 = vld [vmem:[%s1 + $0x140] sm:$0xff]
    %v63 = vld [vmem:[%s1 + $0x148] sm:$0xff]
    %v64 = vld [vmem:[%s1 + $0x150] sm:$0xff]
    %v65 = vld [vmem:[%s1 + $0x158] sm:$0xff]
    %v66 = vld [vmem:[%s1 + $0x160] sm:$0x1f]
    %v67 = vlaneseq
    %v68 = vshrl.u32 %v67, 7
    %v69 = vsub.s32 1, %v68
    %v70 = vrot.slane %v66, %v69
    %v79 = vcombine.low %v12, %v13
    %v80 = vcombine.low %v14, %v15
    %v82 = vunpack.c.l.s4 1983009808
    %v83 = vunpack.c.0.s8 %v82
    %v84 = vlaneseq
    %v85 = vshrl.u32 %v84, 7
    %v86 = vsub.s32 %v83, %v85
    %v87 = vrot.slane %v79, %v86
    %v89 = vunpack.c.l.s4 1983009808
    %v90 = vunpack.c.0.s8 %v89
    %v91 = vlaneseq
    %v92 = vshrl.u32 %v91, 7
    %v93 = vsub.s32 %v90, %v92
    %v94 = vrot.slane %v80, %v93
    %v95 = vcombine.low %v87, %v94
    %v96 = vcombine.low %v16, %v17
    %v97 = vcombine.low %v18, %v19
    %v99 = vunpack.c.l.s4 1983009808
    %v100 = vunpack.c.0.s8 %v99
    %v101 = vlaneseq
    %v102 = vshrl.u32 %v101, 7
    %v103 = vsub.s32 %v100, %v102
    %v104 = vrot.slane %v96, %v103
    %v106 = vunpack.c.l.s4 1983009808
    %v107 = vunpack.c.0.s8 %v106
    %v108 = vlaneseq
    %v109 = vshrl.u32 %v108, 7
    %v110 = vsub.s32 %v107, %v109
    %v111 = vrot.slane %v97, %v110
    %v112 = vcombine.low %v104, %v111
    %vm113 = vcmask 261120
    %v114 = vsel %vm113, %v95, 0
    %v116 = vsel %vm113, %v112, 0
    %118 = vmatprep.subr.mxu0 0.0
    %119 = vmatpush1.msra.mxu0 %v50
    %120 = vmatprep.subr.mxu0 0.0
    %121 = vmatpush1.msra.mxu0 %v51
    %122 = vmatprep.subr.mxu0 0.0
    %123 = vmatpush1.msra.mxu0 %v52
    %124 = vmatprep.subr.mxu0 0.0
    %125 = vmatpush1.msra.mxu0 %v53
    %126 = vmatprep.subr.mxu0 0.0
    %127 = vmatpush1.msra.mxu0 0.0
    %128 = vmatprep.subr.mxu0 0.0
    %129 = vmatpush1.msra.mxu0 0.0
    %130 = vmatprep.subr.mxu0 0.0
    %131 = vmatpush1.msra.mxu0 0.0
    %132 = vmatprep.subr.mxu0 0.0
    %133 = vmatpush1.msra.mxu0 0.0
    %134 = vmatprep.subr.mxu0 0.0
    %135 = vmatpush1.msra.mxu0 0.0
    %136 = vmatprep.subr.mxu0 0.0
    %137 = vmatpush1.msra.mxu0 0.0
    %138 = vmatprep.subr.mxu0 0.0
    %139 = vmatpush1.msra.mxu0 0.0
    %140 = vmatprep.subr.mxu0 0.0
    %141 = vmatpush1.msra.mxu0 0.0
    %142 = vmatprep.subr.mxu0 0.0
    %143 = vmatpush1.msra.mxu0 0.0
    %144 = vmatprep.subr.mxu0 0.0
    %145 = vmatpush1.msra.mxu0 0.0
    %146 = vmatprep.subr.mxu0 0.0
    %147 = vmatpush1.msra.mxu0 0.0
    %148 = vmatprep.subr.mxu0 0.0
    %149 = vmatpush1.msra.mxu0 0.0
    %150 = vmatprep.subr.mxu0 0.0
    %151 = vmatpush1.msra.mxu0 0.0
    %152 = vmatprep.subr.mxu0 0.0
    %153 = vmatpush1.msra.mxu0 0.0
    %154 = vmatprep.subr.mxu0 0.0
    %155 = vmatpush1.msra.mxu0 0.0
    %156 = vmatprep.subr.mxu0 0.0
    %157 = vmatpush1.msra.mxu0 0.0
    %158 = vmatprep.subr.mxu0 0.0
    %159 = vmatpush1.msra.mxu0 0.0
    %160 = vmatprep.subr.mxu0 0.0
    %161 = vmatpush1.msra.mxu0 0.0
    %162 = vmatprep.subr.mxu0 0.0
    %163 = vmatpush1.msra.mxu0 0.0
    %164 = vmatprep.subr.mxu0 0.0
    %165 = vmatpush1.msra.mxu0 0.0
    %166 = vmatprep.subr.mxu0 0.0
    %167 = vmatpush1.msra.mxu0 0.0
    %168 = vmatprep.subr.mxu0 0.0
    %169 = vmatpush1.msra.mxu0 0.0
    %170 = vmatprep.subr.mxu0 0.0
    %171 = vmatpush1.msra.mxu0 0.0
    %172 = vmatprep.subr.mxu0 0.0
    %173 = vmatpush1.msra.mxu0 0.0
    %174 = vmatprep.subr.mxu0 0.0
    %175 = vmatpush1.msra.mxu0 0.0
    %176 = vmatprep.subr.mxu0 0.0
    %177 = vmatpush1.msra.mxu0 0.0
    %178 = vmatprep.subr.mxu0 0.0
    %179 = vmatpush1.msra.mxu0 0.0
    %180 = vmatprep.subr.mxu0 0.0
    %181 = vmatpush1.msra.mxu0 0.0
    %182 = vmatprep.mubr.f32.mxu0 0.0
    %183 = vmatmul.mubr.f32.gmra.mrb[0].mxu0 %v114
    %v184 = vpop.f32.mrb[0].mxu0
    %v185 = vadd.f32 %v70, %v184
    %v186 = vpop.f32.mrb[0].mxu0
    %187 = vmatprep.mubr.f32.mxu0 0.0
    %188 = vmatmul.mubr.f32.gmra.mrb[0].mxu0 %v116
    %v189 = vpop.f32.mrb[0].mxu0
    %v190 = vadd.f32 %v70, %v189
    %v191 = vpop.f32.mrb[0].mxu0
    %192 = vdwg.mxu0
    %v195 = vcombine.high %v185, %v185
    %v197 = vunpack.c.l.s4 1983009808
    %v198 = vunpack.c.0.s8 %v197
    %v199 = vlaneseq
    %v200 = vshrl.u32 %v199, 7
    %v201 = vsub.s32 %v198, %v200
    %v202 = vrot.slane %v185, %v201
    %v204 = vunpack.c.l.s4 1983009808
    %v205 = vunpack.c.0.s8 %v204
    %v206 = vlaneseq
    %v207 = vshrl.u32 %v206, 7
    %v208 = vsub.s32 %v205, %v207
    %v209 = vrot.slane %v195, %v208
    %v210 = vcombine.high %v202, %v202
    %v211 = vcombine.high %v209, %v209
    %v212 = vcombine.high %v190, %v190
    %v214 = vunpack.c.l.s4 1983009808
    %v215 = vunpack.c.0.s8 %v214
    %v216 = vlaneseq
    %v217 = vshrl.u32 %v216, 7
    %v218 = vsub.s32 %v215, %v217
    %v219 = vrot.slane %v190, %v218
    %v221 = vunpack.c.l.s4 1983009808
    %v222 = vunpack.c.0.s8 %v221
    %v223 = vlaneseq
    %v224 = vshrl.u32 %v223, 7
    %v225 = vsub.s32 %v222, %v224
    %v226 = vrot.slane %v212, %v225
    %v227 = vcombine.high %v219, %v219
    %v228 = vcombine.high %v226, %v226
    %v237 = vlaneseq
    %v238 = vshrl.u32 %v237, 7
    %v239 = vsub.s32 2, %v238
    %v240 = vrot.slane %v66, %v239
    %241 = vmatprep.subr.mxu0 0.0
    %242 = vmatpush1.msra.mxu0 %v54
    %243 = vmatprep.subr.mxu0 0.0
    %244 = vmatpush1.msra.mxu0 %v55
    %245 = vmatprep.subr.mxu0 0.0
    %246 = vmatpush1.msra.mxu0 %v56
    %247 = vmatprep.subr.mxu0 0.0
    %248 = vmatpush1.msra.mxu0 %v57
    %249 = vmatprep.subr.mxu0 0.0
    %250 = vmatpush1.msra.mxu0 0.0
    %251 = vmatprep.subr.mxu0 0.0
    %252 = vmatpush1.msra.mxu0 0.0
    %253 = vmatprep.subr.mxu0 0.0
    %254 = vmatpush1.msra.mxu0 0.0
    %255 = vmatprep.subr.mxu0 0.0
    %256 = vmatpush1.msra.mxu0 0.0
    %257 = vmatprep.subr.mxu0 0.0
    %258 = vmatpush1.msra.mxu0 0.0
    %259 = vmatprep.subr.mxu0 0.0
    %260 = vmatpush1.msra.mxu0 0.0
    %261 = vmatprep.subr.mxu0 0.0
    %262 = vmatpush1.msra.mxu0 0.0
    %263 = vmatprep.subr.mxu0 0.0
    %264 = vmatpush1.msra.mxu0 0.0
    %265 = vmatprep.subr.mxu0 0.0
    %266 = vmatpush1.msra.mxu0 0.0
    %267 = vmatprep.subr.mxu0 0.0
    %268 = vmatpush1.msra.mxu0 0.0
    %269 = vmatprep.subr.mxu0 0.0
    %270 = vmatpush1.msra.mxu0 0.0
    %271 = vmatprep.subr.mxu0 0.0
    %272 = vmatpush1.msra.mxu0 0.0
    %273 = vmatprep.subr.mxu0 0.0
    %274 = vmatpush1.msra.mxu0 0.0
    %275 = vmatprep.subr.mxu0 0.0
    %276 = vmatpush1.msra.mxu0 0.0
    %277 = vmatprep.subr.mxu0 0.0
    %278 = vmatpush1.msra.mxu0 0.0
    %279 = vmatprep.subr.mxu0 0.0
    %280 = vmatpush1.msra.mxu0 0.0
    %281 = vmatprep.subr.mxu0 0.0
    %282 = vmatpush1.msra.mxu0 0.0
    %283 = vmatprep.subr.mxu0 0.0
    %284 = vmatpush1.msra.mxu0 0.0
    %285 = vmatprep.subr.mxu0 0.0
    %286 = vmatpush1.msra.mxu0 0.0
    %287 = vmatprep.subr.mxu0 0.0
    %288 = vmatpush1.msra.mxu0 0.0
    %289 = vmatprep.subr.mxu0 0.0
    %290 = vmatpush1.msra.mxu0 0.0
    %291 = vmatprep.subr.mxu0 0.0
    %292 = vmatpush1.msra.mxu0 0.0
    %293 = vmatprep.subr.mxu0 0.0
    %294 = vmatpush1.msra.mxu0 0.0
    %295 = vmatprep.subr.mxu0 0.0
    %296 = vmatpush1.msra.mxu0 0.0
    %297 = vmatprep.subr.mxu0 0.0
    %298 = vmatpush1.msra.mxu0 0.0
    %299 = vmatprep.subr.mxu0 0.0
    %300 = vmatpush1.msra.mxu0 0.0
    %301 = vmatprep.subr.mxu0 0.0
    %302 = vmatpush1.msra.mxu0 0.0
    %303 = vmatprep.subr.mxu0 0.0
    %304 = vmatpush1.msra.mxu0 0.0
    %305 = vmatprep.mubr.f32.mxu0 0.0
    %306 = vmatmul.mubr.f32.gmra.mrb[0].mxu0 %v114
    %v307 = vpop.f32.mrb[0].mxu0
    %v308 = vadd.f32 %v240, %v307
    %v309 = vpop.f32.mrb[0].mxu0
    %310 = vmatprep.mubr.f32.mxu0 0.0
    %311 = vmatmul.mubr.f32.gmra.mrb[0].mxu0 %v116
    %v312 = vpop.f32.mrb[0].mxu0
    %v313 = vadd.f32 %v240, %v312
    %v314 = vpop.f32.mrb[0].mxu0
    %315 = vdwg.mxu0
    %v318 = vcombine.high %v308, %v308
    %v320 = vunpack.c.l.s4 1983009808
    %v321 = vunpack.c.0.s8 %v320
    %v322 = vlaneseq
    %v323 = vshrl.u32 %v322, 7
    %v324 = vsub.s32 %v321, %v323
    %v325 = vrot.slane %v308, %v324
    %v327 = vunpack.c.l.s4 1983009808
    %v328 = vunpack.c.0.s8 %v327
    %v329 = vlaneseq
    %v330 = vshrl.u32 %v329, 7
    %v331 = vsub.s32 %v328, %v330
    %v332 = vrot.slane %v318, %v331
    %v333 = vcombine.high %v325, %v325
    %v334 = vcombine.high %v332, %v332
    %v335 = vcombine.high %v313, %v313
    %v337 = vunpack.c.l.s4 1983009808
    %v338 = vunpack.c.0.s8 %v337
    %v339 = vlaneseq
    %v340 = vshrl.u32 %v339, 7
    %v341 = vsub.s32 %v338, %v340
    %v342 = vrot.slane %v313, %v341
    %v344 = vunpack.c.l.s4 1983009808
    %v345 = vunpack.c.0.s8 %v344
    %v346 = vlaneseq
    %v347 = vshrl.u32 %v346, 7
    %v348 = vsub.s32 %v345, %v347
    %v349 = vrot.slane %v335, %v348
    %v350 = vcombine.high %v342, %v342
    %v351 = vcombine.high %v349, %v349
    %v360 = vmul.f32 %v12, %v20
    %v361 = vmul.f32 %v13, %v20
    %v362 = vmul.f32 %v14, %v20
    %v363 = vmul.f32 %v15, %v20
    %v364 = vmul.f32 %v16, %v20
    %v365 = vmul.f32 %v17, %v20
    %v366 = vmul.f32 %v18, %v20
    %v367 = vmul.f32 %v19, %v20
    %v368 = vsub.f32 %v12, %v20
    %v369 = vsub.f32 %v13, %v20
    %v370 = vsub.f32 %v14, %v20
    %v371 = vsub.f32 %v15, %v20
    %v372 = vsub.f32 %v16, %v20
    %v373 = vsub.f32 %v17, %v20
    %v374 = vsub.f32 %v18, %v20
    %v375 = vsub.f32 %v19, %v20
    %v376 = vand.u32 2147483647, %v368
    %v377 = vand.u32 2147483647, %v369
    %v378 = vand.u32 2147483647, %v370
    %v379 = vand.u32 2147483647, %v371
    %v380 = vand.u32 2147483647, %v372
    %v381 = vand.u32 2147483647, %v373
    %v382 = vand.u32 2147483647, %v374
    %v383 = vand.u32 2147483647, %v375
    %v384 = vlaneseq
    %v385 = vshrl.u32 %v384, 7
    %v386 = vsub.s32 3, %v385
    %v387 = vrot.slane %v66, %v386
    %v389 = vsel %vm113, %v20, 0
    %391 = vmatprep.subr.mxu0 0.0
    %392 = vmatpush1.msra.mxu0 %v46
    %393 = vmatprep.subr.mxu0 0.0
    %394 = vmatpush1.msra.mxu0 %v47
    %395 = vmatprep.subr.mxu0 0.0
    %396 = vmatpush1.msra.mxu0 %v48
    %397 = vmatprep.subr.mxu0 0.0
    %398 = vmatpush1.msra.mxu0 %v49
    %399 = vmatprep.subr.mxu0 0.0
    %400 = vmatpush1.msra.mxu0 0.0
    %401 = vmatprep.subr.mxu0 0.0
    %402 = vmatpush1.msra.mxu0 0.0
    %403 = vmatprep.subr.mxu0 0.0
    %404 = vmatpush1.msra.mxu0 0.0
    %405 = vmatprep.subr.mxu0 0.0
    %406 = vmatpush1.msra.mxu0 0.0
    %407 = vmatprep.subr.mxu0 0.0
    %408 = vmatpush1.msra.mxu0 0.0
    %409 = vmatprep.subr.mxu0 0.0
    %410 = vmatpush1.msra.mxu0 0.0
    %411 = vmatprep.subr.mxu0 0.0
    %412 = vmatpush1.msra.mxu0 0.0
    %413 = vmatprep.subr.mxu0 0.0
    %414 = vmatpush1.msra.mxu0 0.0
    %415 = vmatprep.subr.mxu0 0.0
    %416 = vmatpush1.msra.mxu0 0.0
    %417 = vmatprep.subr.mxu0 0.0
    %418 = vmatpush1.msra.mxu0 0.0
    %419 = vmatprep.subr.mxu0 0.0
    %420 = vmatpush1.msra.mxu0 0.0
    %421 = vmatprep.subr.mxu0 0.0
    %422 = vmatpush1.msra.mxu0 0.0
    %423 = vmatprep.subr.mxu0 0.0
    %424 = vmatpush1.msra.mxu0 0.0
    %425 = vmatprep.subr.mxu0 0.0
    %426 = vmatpush1.msra.mxu0 0.0
    %427 = vmatprep.subr.mxu0 0.0
    %428 = vmatpush1.msra.mxu0 0.0
    %429 = vmatprep.subr.mxu0 0.0
    %430 = vmatpush1.msra.mxu0 0.0
    %431 = vmatprep.subr.mxu0 0.0
    %432 = vmatpush1.msra.mxu0 0.0
    %433 = vmatprep.subr.mxu0 0.0
    %434 = vmatpush1.msra.mxu0 0.0
    %435 = vmatprep.subr.mxu0 0.0
    %436 = vmatpush1.msra.mxu0 0.0
    %437 = vmatprep.subr.mxu0 0.0
    %438 = vmatpush1.msra.mxu0 0.0
    %439 = vmatprep.subr.mxu0 0.0
    %440 = vmatpush1.msra.mxu0 0.0
    %441 = vmatprep.subr.mxu0 0.0
    %442 = vmatpush1.msra.mxu0 0.0
    %443 = vmatprep.subr.mxu0 0.0
    %444 = vmatpush1.msra.mxu0 0.0
    %445 = vmatprep.subr.mxu0 0.0
    %446 = vmatpush1.msra.mxu0 0.0
    %447 = vmatprep.subr.mxu0 0.0
    %448 = vmatpush1.msra.mxu0 0.0
    %449 = vmatprep.subr.mxu0 0.0
    %450 = vmatpush1.msra.mxu0 0.0
    %451 = vmatprep.subr.mxu0 0.0
    %452 = vmatpush1.msra.mxu0 0.0
    %453 = vmatprep.subr.mxu0 0.0
    %454 = vmatpush1.msra.mxu0 0.0
    %455 = vmatprep.mubr.f32.mxu0 0.0
    %456 = vmatmul.mubr.f32.gmra.mrb[0].mxu0 %v389
    %v457 = vpop.f32.mrb[0].mxu0
    %v458 = vadd.f32 %v387, %v457
    %v459 = vpop.f32.mrb[0].mxu0
    %460 = vdwg.mxu0
    %v461 = vmul.f32 %v12, %v21
    %v462 = vmul.f32 %v13, %v21
    %v463 = vmul.f32 %v14, %v21
    %v464 = vmul.f32 %v15, %v21
    %v465 = vmul.f32 %v16, %v21
    %v466 = vmul.f32 %v17, %v21
    %v467 = vmul.f32 %v18, %v21
    %v468 = vmul.f32 %v19, %v21
    %v469 = vsub.f32 %v12, %v21
    %v470 = vsub.f32 %v13, %v21
    %v471 = vsub.f32 %v14, %v21
    %v472 = vsub.f32 %v15, %v21
    %v473 = vsub.f32 %v16, %v21
    %v474 = vsub.f32 %v17, %v21
    %v475 = vsub.f32 %v18, %v21
    %v476 = vsub.f32 %v19, %v21
    %v477 = vand.u32 2147483647, %v469
    %v478 = vand.u32 2147483647, %v470
    %v479 = vand.u32 2147483647, %v471
    %v480 = vand.u32 2147483647, %v472
    %v481 = vand.u32 2147483647, %v473
    %v482 = vand.u32 2147483647, %v474
    %v483 = vand.u32 2147483647, %v475
    %v484 = vand.u32 2147483647, %v476
    %493 = vrot.lane.b32.xlu0 %v461, 32
    %v494 = vpop.permute.xlu0 %493
    %495 = vrot.lane.b32.xlu0 %v462, 32
    %v496 = vpop.permute.xlu0 %495
    %497 = vrot.lane.b32.xlu0 %v463, 32
    %v498 = vpop.permute.xlu0 %497
    %499 = vrot.lane.b32.xlu0 %v464, 32
    %v500 = vpop.permute.xlu0 %499
    %501 = vrot.lane.b32.xlu0 %v465, 32
    %v502 = vpop.permute.xlu0 %501
    %503 = vrot.lane.b32.xlu0 %v466, 32
    %v504 = vpop.permute.xlu0 %503
    %505 = vrot.lane.b32.xlu0 %v467, 32
    %v506 = vpop.permute.xlu0 %505
    %507 = vrot.lane.b32.xlu0 %v468, 32
    %v508 = vpop.permute.xlu0 %507
    %525 = vrot.lane.b32.xlu0 %v376, 64
    %v526 = vpop.permute.xlu0 %525
    %527 = vrot.lane.b32.xlu0 %v377, 64
    %v528 = vpop.permute.xlu0 %527
    %529 = vrot.lane.b32.xlu0 %v378, 64
    %v530 = vpop.permute.xlu0 %529
    %531 = vrot.lane.b32.xlu0 %v379, 64
    %v532 = vpop.permute.xlu0 %531
    %533 = vrot.lane.b32.xlu0 %v380, 64
    %v534 = vpop.permute.xlu0 %533
    %535 = vrot.lane.b32.xlu0 %v381, 64
    %v536 = vpop.permute.xlu0 %535
    %537 = vrot.lane.b32.xlu0 %v382, 64
    %v538 = vpop.permute.xlu0 %537
    %539 = vrot.lane.b32.xlu0 %v383, 64
    %v540 = vpop.permute.xlu0 %539
    %557 = vrot.lane.b32.xlu0 %v477, 96
    %v558 = vpop.permute.xlu0 %557
    %559 = vrot.lane.b32.xlu0 %v478, 96
    %v560 = vpop.permute.xlu0 %559
    %561 = vrot.lane.b32.xlu0 %v479, 96
    %v562 = vpop.permute.xlu0 %561
    %563 = vrot.lane.b32.xlu0 %v480, 96
    %v564 = vpop.permute.xlu0 %563
    %565 = vrot.lane.b32.xlu0 %v481, 96
    %v566 = vpop.permute.xlu0 %565
    %567 = vrot.lane.b32.xlu0 %v482, 96
    %v568 = vpop.permute.xlu0 %567
    %569 = vrot.lane.b32.xlu0 %v483, 96
    %v570 = vpop.permute.xlu0 %569
    %571 = vrot.lane.b32.xlu0 %v484, 96
    %v572 = vpop.permute.xlu0 %571
    %v581 = vsel %vm113, %v360, %v494
    %v582 = vsel %vm113, %v361, %v496
    %v583 = vsel %vm113, %v362, %v498
    %v584 = vsel %vm113, %v363, %v500
    %v585 = vsel %vm113, %v364, %v502
    %v586 = vsel %vm113, %v365, %v504
    %v587 = vsel %vm113, %v366, %v506
    %v588 = vsel %vm113, %v367, %v508
    %vm589 = vcmask 523264
    %v590 = vsel %vm589, %v581, %v526
    %v591 = vsel %vm589, %v582, %v528
    %v592 = vsel %vm589, %v583, %v530
    %v593 = vsel %vm589, %v584, %v532
    %v594 = vsel %vm589, %v585, %v534
    %v595 = vsel %vm589, %v586, %v536
    %v596 = vsel %vm589, %v587, %v538
    %v597 = vsel %vm589, %v588, %v540
    %vm598 = vcmask 785408
    %v599 = vsel %vm598, %v590, %v558
    %v600 = vsel %vm598, %v591, %v560
    %v601 = vsel %vm598, %v592, %v562
    %v602 = vsel %vm598, %v593, %v564
    %v603 = vsel %vm598, %v594, %v566
    %v604 = vsel %vm598, %v595, %v568
    %v605 = vsel %vm598, %v596, %v570
    %v606 = vsel %vm598, %v597, %v572
    %v607 = vlaneseq
    %v608 = vshrl.u32 %v607, 7
    %v609 = vsub.s32 0, %v608
    %v610 = vrot.slane %v66, %v609
    %v619 = vcombine.low %v599, %v600
    %v620 = vcombine.low %v601, %v602
    %v622 = vunpack.c.l.s4 1983009808
    %v623 = vunpack.c.0.s8 %v622
    %v624 = vlaneseq
    %v625 = vshrl.u32 %v624, 7
    %v626 = vsub.s32 %v623, %v625
    %v627 = vrot.slane %v619, %v626
    %v629 = vunpack.c.l.s4 1983009808
    %v630 = vunpack.c.0.s8 %v629
    %v631 = vlaneseq
    %v632 = vshrl.u32 %v631, 7
    %v633 = vsub.s32 %v630, %v632
    %v634 = vrot.slane %v620, %v633
    %v635 = vcombine.low %v627, %v634
    %v636 = vcombine.low %v603, %v604
    %v637 = vcombine.low %v605, %v606
    %v639 = vunpack.c.l.s4 1983009808
    %v640 = vunpack.c.0.s8 %v639
    %v641 = vlaneseq
    %v642 = vshrl.u32 %v641, 7
    %v643 = vsub.s32 %v640, %v642
    %v644 = vrot.slane %v636, %v643
    %v646 = vunpack.c.l.s4 1983009808
    %v647 = vunpack.c.0.s8 %v646
    %v648 = vlaneseq
    %v649 = vshrl.u32 %v648, 7
    %v650 = vsub.s32 %v647, %v649
    %v651 = vrot.slane %v637, %v650
    %v652 = vcombine.low %v644, %v651
    %655 = vmatprep.subr.mxu0 0.0
    %656 = vmatpush1.msra.mxu0 %v22
    %657 = vmatprep.subr.mxu0 0.0
    %658 = vmatpush1.msra.mxu0 %v23
    %659 = vmatprep.subr.mxu0 0.0
    %660 = vmatpush1.msra.mxu0 %v24
    %661 = vmatprep.subr.mxu0 0.0
    %662 = vmatpush1.msra.mxu0 %v25
    %663 = vmatprep.subr.mxu0 0.0
    %664 = vmatpush1.msra.mxu0 %v26
    %665 = vmatprep.subr.mxu0 0.0
    %666 = vmatpush1.msra.mxu0 %v27
    %667 = vmatprep.subr.mxu0 0.0
    %668 = vmatpush1.msra.mxu0 %v28
    %669 = vmatprep.subr.mxu0 0.0
    %670 = vmatpush1.msra.mxu0 %v29
    %671 = vmatprep.subr.mxu0 0.0
    %672 = vmatpush1.msra.mxu0 %v30
    %673 = vmatprep.subr.mxu0 0.0
    %674 = vmatpush1.msra.mxu0 %v31
    %675 = vmatprep.subr.mxu0 0.0
    %676 = vmatpush1.msra.mxu0 %v32
    %677 = vmatprep.subr.mxu0 0.0
    %678 = vmatpush1.msra.mxu0 %v33
    %679 = vmatprep.subr.mxu0 0.0
    %680 = vmatpush1.msra.mxu0 %v34
    %681 = vmatprep.subr.mxu0 0.0
    %682 = vmatpush1.msra.mxu0 %v35
    %683 = vmatprep.subr.mxu0 0.0
    %684 = vmatpush1.msra.mxu0 %v36
    %685 = vmatprep.subr.mxu0 0.0
    %686 = vmatpush1.msra.mxu0 %v37
    %687 = vmatprep.subr.mxu0 0.0
    %688 = vmatpush1.msra.mxu0 0.0
    %689 = vmatprep.subr.mxu0 0.0
    %690 = vmatpush1.msra.mxu0 0.0
    %691 = vmatprep.subr.mxu0 0.0
    %692 = vmatpush1.msra.mxu0 0.0
    %693 = vmatprep.subr.mxu0 0.0
    %694 = vmatpush1.msra.mxu0 0.0
    %695 = vmatprep.subr.mxu0 0.0
    %696 = vmatpush1.msra.mxu0 0.0
    %697 = vmatprep.subr.mxu0 0.0
    %698 = vmatpush1.msra.mxu0 0.0
    %699 = vmatprep.subr.mxu0 0.0
    %700 = vmatpush1.msra.mxu0 0.0
    %701 = vmatprep.subr.mxu0 0.0
    %702 = vmatpush1.msra.mxu0 0.0
    %703 = vmatprep.subr.mxu0 0.0
    %704 = vmatpush1.msra.mxu0 0.0
    %705 = vmatprep.subr.mxu0 0.0
    %706 = vmatpush1.msra.mxu0 0.0
    %707 = vmatprep.subr.mxu0 0.0
    %708 = vmatpush1.msra.mxu0 0.0
    %709 = vmatprep.subr.mxu0 0.0
    %710 = vmatpush1.msra.mxu0 0.0
    %711 = vmatprep.subr.mxu0 0.0
    %712 = vmatpush1.msra.mxu0 0.0
    %713 = vmatprep.subr.mxu0 0.0
    %714 = vmatpush1.msra.mxu0 0.0
    %715 = vmatprep.subr.mxu0 0.0
    %716 = vmatpush1.msra.mxu0 0.0
    %717 = vmatprep.subr.mxu0 0.0
    %718 = vmatpush1.msra.mxu0 0.0
    %719 = vmatprep.mubr.f32.mxu0 0.0
    %720 = vmatmul.mubr.f32.gmra.mrb[0].mxu0 %v635
    %v721 = vpop.f32.mrb[0].mxu0
    %v722 = vadd.f32 %v610, %v721
    %v723 = vpop.f32.mrb[0].mxu0
    %724 = vmatprep.mubr.f32.mxu0 0.0
    %725 = vmatmul.mubr.f32.gmra.mrb[0].mxu0 %v652
    %v726 = vpop.f32.mrb[0].mxu0
    %v727 = vadd.f32 %v610, %v726
    %v728 = vpop.f32.mrb[0].mxu0
    %729 = vdwg.mxu0
    %v730 = vtanh.pop %v722
    %v731 = vtanh.pop %v727
    %v734 = vcombine.high %v730, %v730
    %v736 = vunpack.c.l.s4 1983009808
    %v737 = vunpack.c.0.s8 %v736
    %v738 = vlaneseq
    %v739 = vshrl.u32 %v738, 7
    %v740 = vsub.s32 %v737, %v739
    %v741 = vrot.slane %v730, %v740
    %v743 = vunpack.c.l.s4 1983009808
    %v744 = vunpack.c.0.s8 %v743
    %v745 = vlaneseq
    %v746 = vshrl.u32 %v745, 7
    %v747 = vsub.s32 %v744, %v746
    %v748 = vrot.slane %v734, %v747
    %v749 = vcombine.high %v741, %v741
    %v750 = vcombine.high %v748, %v748
    %v751 = vcombine.high %v731, %v731
    %v753 = vunpack.c.l.s4 1983009808
    %v754 = vunpack.c.0.s8 %v753
    %v755 = vlaneseq
    %v756 = vshrl.u32 %v755, 7
    %v757 = vsub.s32 %v754, %v756
    %v758 = vrot.slane %v731, %v757
    %v760 = vunpack.c.l.s4 1983009808
    %v761 = vunpack.c.0.s8 %v760
    %v762 = vlaneseq
    %v763 = vshrl.u32 %v762, 7
    %v764 = vsub.s32 %v761, %v763
    %v765 = vrot.slane %v751, %v764
    %v766 = vcombine.high %v758, %v758
    %v767 = vcombine.high %v765, %v765
    %v776 = vlaneseq
    %v777 = vshrl.u32 %v776, 7
    %v778 = vsub.s32 4, %v777
    %v779 = vrot.slane %v66, %v778
    %v780 = vmul.f32 %v741, %v779
    %v781 = vmul.f32 %v749, %v779
    %v782 = vmul.f32 %v748, %v779
    %v783 = vmul.f32 %v750, %v779
    %v784 = vmul.f32 %v758, %v779
    %v785 = vmul.f32 %v766, %v779
    %v786 = vmul.f32 %v765, %v779
    %v787 = vmul.f32 %v767, %v779
    %vm788 = vcmask 254976
    %v789 = vsel %vm788, %v780, 0.0
    %790 = vadd.xlane.f32.xlu0 %v789
    %v791 = vpop.xlane.xlu0 %790
    %v792 = vsel %vm788, %v781, 0.0
    %793 = vadd.xlane.f32.xlu0 %v792
    %v794 = vpop.xlane.xlu0 %793
    %v795 = vsel %vm788, %v782, 0.0
    %796 = vadd.xlane.f32.xlu0 %v795
    %v797 = vpop.xlane.xlu0 %796
    %v798 = vsel %vm788, %v783, 0.0
    %799 = vadd.xlane.f32.xlu0 %v798
    %v800 = vpop.xlane.xlu0 %799
    %v801 = vsel %vm788, %v784, 0.0
    %802 = vadd.xlane.f32.xlu0 %v801
    %v803 = vpop.xlane.xlu0 %802
    %v804 = vsel %vm788, %v785, 0.0
    %805 = vadd.xlane.f32.xlu0 %v804
    %v806 = vpop.xlane.xlu0 %805
    %v807 = vsel %vm788, %v786, 0.0
    %808 = vadd.xlane.f32.xlu0 %v807
    %v809 = vpop.xlane.xlu0 %808
    %v810 = vsel %vm788, %v787, 0.0
    %811 = vadd.xlane.f32.xlu0 %v810
    %v812 = vpop.xlane.xlu0 %811
    %vm813 = vcmask 1041408
    %v814 = vsel %vm813, %v791, -inf
    %v815 = vsel %vm813, %v794, -inf
    %v816 = vsel %vm813, %v797, -inf
    %v817 = vsel %vm813, %v800, -inf
    %v818 = vsel %vm813, %v803, -inf
    %v819 = vmax.f32 %v814, %v818
    %v820 = vsel %vm813, %v806, -inf
    %v821 = vmax.f32 %v815, %v820
    %v822 = vsel %vm813, %v809, -inf
    %v823 = vmax.f32 %v816, %v822
    %v824 = vsel %vm813, %v812, -inf
    %v825 = vmax.f32 %v817, %v824
    %v826 = vmax.f32 %v819, %v821
    %v827 = vmax.f32 %v823, %v825
    %v828 = vmax.f32 %v826, %v827
    %v829 = vsub.f32 %v791, %v828
    %v830 = vsub.f32 %v794, %v828
    %v831 = vsub.f32 %v797, %v828
    %v832 = vsub.f32 %v800, %v828
    %v833 = vsub.f32 %v803, %v828
    %v834 = vsub.f32 %v806, %v828
    %v835 = vsub.f32 %v809, %v828
    %v836 = vsub.f32 %v812, %v828
    %v837 = vmul.f32 %v829, 1.442695
    %v838 = vpow.pop %v837
    %v839 = vmul.f32 %v830, 1.442695
    %v840 = vpow.pop %v839
    %v841 = vmul.f32 %v831, 1.442695
    %v842 = vpow.pop %v841
    %v843 = vmul.f32 %v832, 1.442695
    %v844 = vpow.pop %v843
    %v845 = vmul.f32 %v833, 1.442695
    %v846 = vpow.pop %v845
    %v847 = vmul.f32 %v834, 1.442695
    %v848 = vpow.pop %v847
    %v849 = vmul.f32 %v835, 1.442695
    %v850 = vpow.pop %v849
    %v851 = vmul.f32 %v836, 1.442695
    %v852 = vpow.pop %v851
    %v853 = vsel %vm813, %v838, 0.0
    %v854 = vsel %vm813, %v840, 0.0
    %v855 = vadd.f32 %v853, %v854
    %v856 = vsel %vm813, %v842, 0.0
    %v857 = vadd.f32 %v855, %v856
    %v858 = vsel %vm813, %v844, 0.0
    %v859 = vadd.f32 %v857, %v858
    %v860 = vsel %vm813, %v846, 0.0
    %v861 = vadd.f32 %v859, %v860
    %v862 = vsel %vm813, %v848, 0.0
    %v863 = vadd.f32 %v861, %v862
    %v864 = vsel %vm813, %v850, 0.0
    %v865 = vadd.f32 %v863, %v864
    %v866 = vsel %vm813, %v852, 0.0
    %v867 = vadd.f32 %v865, %v866
    %v868 = vrcp.pop %v867
    %v869 = vmul.f32 %v838, %v868
    %v870 = vmul.f32 %v840, %v868
    %v871 = vmul.f32 %v842, %v868
    %v872 = vmul.f32 %v844, %v868
    %v873 = vmul.f32 %v846, %v868
    %v874 = vmul.f32 %v848, %v868
    %v875 = vmul.f32 %v850, %v868
    %v876 = vmul.f32 %v852, %v868
    %v877 = vsub.f32 1.0, %v869
    %v878 = vsub.f32 1.0, %v870
    %v879 = vsub.f32 1.0, %v871
    %v880 = vsub.f32 1.0, %v872
    %v881 = vsub.f32 1.0, %v873
    %v882 = vsub.f32 1.0, %v874
    %v883 = vsub.f32 1.0, %v875
    %v884 = vsub.f32 1.0, %v876
    %v886 = vsel %vm113, %v21, 0
    %888 = vmatprep.subr.mxu0 0.0
    %889 = vmatpush1.msra.mxu0 %v38
    %890 = vmatprep.subr.mxu0 0.0
    %891 = vmatpush1.msra.mxu0 %v39
    %892 = vmatprep.subr.mxu0 0.0
    %893 = vmatpush1.msra.mxu0 %v40
    %894 = vmatprep.subr.mxu0 0.0
    %895 = vmatpush1.msra.mxu0 %v41
    %896 = vmatprep.subr.mxu0 0.0
    %897 = vmatpush1.msra.mxu0 0.0
    %898 = vmatprep.subr.mxu0 0.0
    %899 = vmatpush1.msra.mxu0 0.0
    %900 = vmatprep.subr.mxu0 0.0
    %901 = vmatpush1.msra.mxu0 0.0
    %902 = vmatprep.subr.mxu0 0.0
    %903 = vmatpush1.msra.mxu0 0.0
    %904 = vmatprep.subr.mxu0 0.0
    %905 = vmatpush1.msra.mxu0 0.0
    %906 = vmatprep.subr.mxu0 0.0
    %907 = vmatpush1.msra.mxu0 0.0
    %908 = vmatprep.subr.mxu0 0.0
    %909 = vmatpush1.msra.mxu0 0.0
    %910 = vmatprep.subr.mxu0 0.0
    %911 = vmatpush1.msra.mxu0 0.0
    %912 = vmatprep.subr.mxu0 0.0
    %913 = vmatpush1.msra.mxu0 0.0
    %914 = vmatprep.subr.mxu0 0.0
    %915 = vmatpush1.msra.mxu0 0.0
    %916 = vmatprep.subr.mxu0 0.0
    %917 = vmatpush1.msra.mxu0 0.0
    %918 = vmatprep.subr.mxu0 0.0
    %919 = vmatpush1.msra.mxu0 0.0
    %920 = vmatprep.subr.mxu0 0.0
    %921 = vmatpush1.msra.mxu0 0.0
    %922 = vmatprep.subr.mxu0 0.0
    %923 = vmatpush1.msra.mxu0 0.0
    %924 = vmatprep.subr.mxu0 0.0
    %925 = vmatpush1.msra.mxu0 0.0
    %926 = vmatprep.subr.mxu0 0.0
    %927 = vmatpush1.msra.mxu0 0.0
    %928 = vmatprep.subr.mxu0 0.0
    %929 = vmatpush1.msra.mxu0 0.0
    %930 = vmatprep.subr.mxu0 0.0
    %931 = vmatpush1.msra.mxu0 0.0
    %932 = vmatprep.subr.mxu0 0.0
    %933 = vmatpush1.msra.mxu0 0.0
    %934 = vmatprep.subr.mxu0 0.0
    %935 = vmatpush1.msra.mxu0 0.0
    %936 = vmatprep.subr.mxu0 0.0
    %937 = vmatpush1.msra.mxu0 0.0
    %938 = vmatprep.subr.mxu0 0.0
    %939 = vmatpush1.msra.mxu0 0.0
    %940 = vmatprep.subr.mxu0 0.0
    %941 = vmatpush1.msra.mxu0 0.0
    %942 = vmatprep.subr.mxu0 0.0
    %943 = vmatpush1.msra.mxu0 0.0
    %944 = vmatprep.subr.mxu0 0.0
    %945 = vmatpush1.msra.mxu0 0.0
    %946 = vmatprep.subr.mxu0 0.0
    %947 = vmatpush1.msra.mxu0 0.0
    %948 = vmatprep.subr.mxu0 0.0
    %949 = vmatpush1.msra.mxu0 0.0
    %950 = vmatprep.subr.mxu0 0.0
    %951 = vmatpush1.msra.mxu0 0.0
    %952 = vmatprep.mubr.f32.mxu0 0.0
    %953 = vmatmul.mubr.f32.gmra.mrb[0].mxu0 %v886
    %v954 = vpop.f32.mrb[0].mxu0
    %v955 = vadd.f32 0.0, %v954
    %v956 = vpop.f32.mrb[0].mxu0
    %957 = vdwg.mxu0
    %v959 = vsel %vm113, 0.0, 0
    %961 = vmatprep.subr.mxu0 0.0
    %962 = vmatpush1.msra.mxu0 %v58
    %963 = vmatprep.subr.mxu0 0.0
    %964 = vmatpush1.msra.mxu0 %v59
    %965 = vmatprep.subr.mxu0 0.0
    %966 = vmatpush1.msra.mxu0 %v60
    %967 = vmatprep.subr.mxu0 0.0
    %968 = vmatpush1.msra.mxu0 %v61
    %969 = vmatprep.subr.mxu0 0.0
    %970 = vmatpush1.msra.mxu0 0.0
    %971 = vmatprep.subr.mxu0 0.0
    %972 = vmatpush1.msra.mxu0 0.0
    %973 = vmatprep.subr.mxu0 0.0
    %974 = vmatpush1.msra.mxu0 0.0
    %975 = vmatprep.subr.mxu0 0.0
    %976 = vmatpush1.msra.mxu0 0.0
    %977 = vmatprep.subr.mxu0 0.0
    %978 = vmatpush1.msra.mxu0 0.0
    %979 = vmatprep.subr.mxu0 0.0
    %980 = vmatpush1.msra.mxu0 0.0
    %981 = vmatprep.subr.mxu0 0.0
    %982 = vmatpush1.msra.mxu0 0.0
    %983 = vmatprep.subr.mxu0 0.0
    %984 = vmatpush1.msra.mxu0 0.0
    %985 = vmatprep.subr.mxu0 0.0
    %986 = vmatpush1.msra.mxu0 0.0
    %987 = vmatprep.subr.mxu0 0.0
    %988 = vmatpush1.msra.mxu0 0.0
    %989 = vmatprep.subr.mxu0 0.0
    %990 = vmatpush1.msra.mxu0 0.0
    %991 = vmatprep.subr.mxu0 0.0
    %992 = vmatpush1.msra.mxu0 0.0
    %993 = vmatprep.subr.mxu0 0.0
    %994 = vmatpush1.msra.mxu0 0.0
    %995 = vmatprep.subr.mxu0 0.0
    %996 = vmatpush1.msra.mxu0 0.0
    %997 = vmatprep.subr.mxu0 0.0
    %998 = vmatpush1.msra.mxu0 0.0
    %999 = vmatprep.subr.mxu0 0.0
    %1000 = vmatpush1.msra.mxu0 0.0
    %1001 = vmatprep.subr.mxu0 0.0
    %1002 = vmatpush1.msra.mxu0 0.0
    %1003 = vmatprep.subr.mxu0 0.0
    %1004 = vmatpush1.msra.mxu0 0.0
    %1005 = vmatprep.subr.mxu0 0.0
    %1006 = vmatpush1.msra.mxu0 0.0
    %1007 = vmatprep.subr.mxu0 0.0
    %1008 = vmatpush1.msra.mxu0 0.0
    %1009 = vmatprep.subr.mxu0 0.0
    %1010 = vmatpush1.msra.mxu0 0.0
    %1011 = vmatprep.subr.mxu0 0.0
    %1012 = vmatpush1.msra.mxu0 0.0
    %1013 = vmatprep.subr.mxu0 0.0
    %1014 = vmatpush1.msra.mxu0 0.0
    %1015 = vmatprep.subr.mxu0 0.0
    %1016 = vmatpush1.msra.mxu0 0.0
    %1017 = vmatprep.subr.mxu0 0.0
    %1018 = vmatpush1.msra.mxu0 0.0
    %1019 = vmatprep.subr.mxu0 0.0
    %1020 = vmatpush1.msra.mxu0 0.0
    %1021 = vmatprep.subr.mxu0 0.0
    %1022 = vmatpush1.msra.mxu0 0.0
    %1023 = vmatprep.subr.mxu0 0.0
    %1024 = vmatpush1.msra.mxu0 0.0
    %1025 = vmatprep.mubr.f32.mxu0 0.0
    %1026 = vmatmul.mubr.f32.gmra.mrb[0].mxu0 %v959
    %v1027 = vpop.f32.mrb[0].mxu0
    %v1028 = vadd.f32 0.0, %v1027
    %v1029 = vpop.f32.mrb[0].mxu0
    %1030 = vdwg.mxu0
    %1031 = vmatprep.subr.mxu0 0.0
    %1032 = vmatpush1.msra.mxu0 %v62
    %1033 = vmatprep.subr.mxu0 0.0
    %1034 = vmatpush1.msra.mxu0 %v63
    %1035 = vmatprep.subr.mxu0 0.0
    %1036 = vmatpush1.msra.mxu0 %v64
    %1037 = vmatprep.subr.mxu0 0.0
    %1038 = vmatpush1.msra.mxu0 %v65
    %1039 = vmatprep.subr.mxu0 0.0
    %1040 = vmatpush1.msra.mxu0 0.0
    %1041 = vmatprep.subr.mxu0 0.0
    %1042 = vmatpush1.msra.mxu0 0.0
    %1043 = vmatprep.subr.mxu0 0.0
    %1044 = vmatpush1.msra.mxu0 0.0
    %1045 = vmatprep.subr.mxu0 0.0
    %1046 = vmatpush1.msra.mxu0 0.0
    %1047 = vmatprep.subr.mxu0 0.0
    %1048 = vmatpush1.msra.mxu0 0.0
    %1049 = vmatprep.subr.mxu0 0.0
    %1050 = vmatpush1.msra.mxu0 0.0
    %1051 = vmatprep.subr.mxu0 0.0
    %1052 = vmatpush1.msra.mxu0 0.0
    %1053 = vmatprep.subr.mxu0 0.0
    %1054 = vmatpush1.msra.mxu0 0.0
    %1055 = vmatprep.subr.mxu0 0.0
    %1056 = vmatpush1.msra.mxu0 0.0
    %1057 = vmatprep.subr.mxu0 0.0
    %1058 = vmatpush1.msra.mxu0 0.0
    %1059 = vmatprep.subr.mxu0 0.0
    %1060 = vmatpush1.msra.mxu0 0.0
    %1061 = vmatprep.subr.mxu0 0.0
    %1062 = vmatpush1.msra.mxu0 0.0
    %1063 = vmatprep.subr.mxu0 0.0
    %1064 = vmatpush1.msra.mxu0 0.0
    %1065 = vmatprep.subr.mxu0 0.0
    %1066 = vmatpush1.msra.mxu0 0.0
    %1067 = vmatprep.subr.mxu0 0.0
    %1068 = vmatpush1.msra.mxu0 0.0
    %1069 = vmatprep.subr.mxu0 0.0
    %1070 = vmatpush1.msra.mxu0 0.0
    %1071 = vmatprep.subr.mxu0 0.0
    %1072 = vmatpush1.msra.mxu0 0.0
    %1073 = vmatprep.subr.mxu0 0.0
    %1074 = vmatpush1.msra.mxu0 0.0
    %1075 = vmatprep.subr.mxu0 0.0
    %1076 = vmatpush1.msra.mxu0 0.0
    %1077 = vmatprep.subr.mxu0 0.0
    %1078 = vmatpush1.msra.mxu0 0.0
    %1079 = vmatprep.subr.mxu0 0.0
    %1080 = vmatpush1.msra.mxu0 0.0
    %1081 = vmatprep.subr.mxu0 0.0
    %1082 = vmatpush1.msra.mxu0 0.0
    %1083 = vmatprep.subr.mxu0 0.0
    %1084 = vmatpush1.msra.mxu0 0.0
    %1085 = vmatprep.subr.mxu0 0.0
    %1086 = vmatpush1.msra.mxu0 0.0
    %1087 = vmatprep.subr.mxu0 0.0
    %1088 = vmatpush1.msra.mxu0 0.0
    %1089 = vmatprep.subr.mxu0 0.0
    %1090 = vmatpush1.msra.mxu0 0.0
    %1091 = vmatprep.subr.mxu0 0.0
    %1092 = vmatpush1.msra.mxu0 0.0
    %1093 = vmatprep.subr.mxu0 0.0
    %1094 = vmatpush1.msra.mxu0 0.0
    %1095 = vmatprep.mubr.f32.mxu0 0.0
    %1096 = vmatmul.mubr.f32.gmra.mrb[0].mxu0 %v959
    %v1097 = vpop.f32.mrb[0].mxu0
    %v1098 = vadd.f32 0.0, %v1097
    %v1099 = vpop.f32.mrb[0].mxu0
    %1100 = vdwg.mxu0
    %v1101 = vadd.f32 %v202, %v1028
    %v1102 = vxor.u32 %v1101, 2147483648
    %v1103 = vmul.f32 %v1102, 1.442695
    %v1104 = vpow.pop %v1103
    %v1105 = vadd.f32 %v1104, 1.0
    %v1106 = vrcp.pop %v1105
    %v1107 = vmul.f32 1.0, %v1106
    %v1108 = vmul.f32 %v1107, %v1098
    %v1109 = vadd.f32 %v325, %v1108
    %v1110 = vtanh.pop %v1109
    %v1111 = vmul.f32 %v869, %v1110
    %v1112 = vmul.f32 %v877, 0.0
    %v1113 = vadd.f32 %v1111, %v1112
    %v1115 = vsel %vm113, %v1113, 0
    %1117 = vmatprep.subr.mxu0 0.0
    %1118 = vmatpush1.msra.mxu0 %v58
    %1119 = vmatprep.subr.mxu0 0.0
    %1120 = vmatpush1.msra.mxu0 %v59
    %1121 = vmatprep.subr.mxu0 0.0
    %1122 = vmatpush1.msra.mxu0 %v60
    %1123 = vmatprep.subr.mxu0 0.0
    %1124 = vmatpush1.msra.mxu0 %v61
    %1125 = vmatprep.subr.mxu0 0.0
    %1126 = vmatpush1.msra.mxu0 0.0
    %1127 = vmatprep.subr.mxu0 0.0
    %1128 = vmatpush1.msra.mxu0 0.0
    %1129 = vmatprep.subr.mxu0 0.0
    %1130 = vmatpush1.msra.mxu0 0.0
    %1131 = vmatprep.subr.mxu0 0.0
    %1132 = vmatpush1.msra.mxu0 0.0
    %1133 = vmatprep.subr.mxu0 0.0
    %1134 = vmatpush1.msra.mxu0 0.0
    %1135 = vmatprep.subr.mxu0 0.0
    %1136 = vmatpush1.msra.mxu0 0.0
    %1137 = vmatprep.subr.mxu0 0.0
    %1138 = vmatpush1.msra.mxu0 0.0
    %1139 = vmatprep.subr.mxu0 0.0
    %1140 = vmatpush1.msra.mxu0 0.0
    %1141 = vmatprep.subr.mxu0 0.0
    %1142 = vmatpush1.msra.mxu0 0.0
    %1143 = vmatprep.subr.mxu0 0.0
    %1144 = vmatpush1.msra.mxu0 0.0
    %1145 = vmatprep.subr.mxu0 0.0
    %1146 = vmatpush1.msra.mxu0 0.0
    %1147 = vmatprep.subr.mxu0 0.0
    %1148 = vmatpush1.msra.mxu0 0.0
    %1149 = vmatprep.subr.mxu0 0.0
    %1150 = vmatpush1.msra.mxu0 0.0
    %1151 = vmatprep.subr.mxu0 0.0
    %1152 = vmatpush1.msra.mxu0 0.0
    %1153 = vmatprep.subr.mxu0 0.0
    %1154 = vmatpush1.msra.mxu0 0.0
    %1155 = vmatprep.subr.mxu0 0.0
    %1156 = vmatpush1.msra.mxu0 0.0
    %1157 = vmatprep.subr.mxu0 0.0
    %1158 = vmatpush1.msra.mxu0 0.0
    %1159 = vmatprep.subr.mxu0 0.0
    %1160 = vmatpush1.msra.mxu0 0.0
    %1161 = vmatprep.subr.mxu0 0.0
    %1162 = vmatpush1.msra.mxu0 0.0
    %1163 = vmatprep.subr.mxu0 0.0
    %1164 = vmatpush1.msra.mxu0 0.0
    %1165 = vmatprep.subr.mxu0 0.0
    %1166 = vmatpush1.msra.mxu0 0.0
    %1167 = vmatprep.subr.mxu0 0.0
    %1168 = vmatpush1.msra.mxu0 0.0
    %1169 = vmatprep.subr.mxu0 0.0
    %1170 = vmatpush1.msra.mxu0 0.0
    %1171 = vmatprep.subr.mxu0 0.0
    %1172 = vmatpush1.msra.mxu0 0.0
    %1173 = vmatprep.subr.mxu0 0.0
    %1174 = vmatpush1.msra.mxu0 0.0
    %1175 = vmatprep.subr.mxu0 0.0
    %1176 = vmatpush1.msra.mxu0 0.0
    %1177 = vmatprep.subr.mxu0 0.0
    %1178 = vmatpush1.msra.mxu0 0.0
    %1179 = vmatprep.subr.mxu0 0.0
    %1180 = vmatpush1.msra.mxu0 0.0
    %1181 = vmatprep.mubr.f32.mxu0 0.0
    %1182 = vmatmul.mubr.f32.gmra.mrb[0].mxu0 %v1115
    %v1183 = vpop.f32.mrb[0].mxu0
    %v1184 = vadd.f32 0.0, %v1183
    %v1185 = vpop.f32.mrb[0].mxu0
    %1186 = vdwg.mxu0
    %1187 = vmatprep.subr.mxu0 0.0
    %1188 = vmatpush1.msra.mxu0 %v62
    %1189 = vmatprep.subr.mxu0 0.0
    %1190 = vmatpush1.msra.mxu0 %v63
    %1191 = vmatprep.subr.mxu0 0.0
    %1192 = vmatpush1.msra.mxu0 %v64
    %1193 = vmatprep.subr.mxu0 0.0
    %1194 = vmatpush1.msra.mxu0 %v65
    %1195 = vmatprep.subr.mxu0 0.0
    %1196 = vmatpush1.msra.mxu0 0.0
    %1197 = vmatprep.subr.mxu0 0.0
    %1198 = vmatpush1.msra.mxu0 0.0
    %1199 = vmatprep.subr.mxu0 0.0
    %1200 = vmatpush1.msra.mxu0 0.0
    %1201 = vmatprep.subr.mxu0 0.0
    %1202 = vmatpush1.msra.mxu0 0.0
    %1203 = vmatprep.subr.mxu0 0.0
    %1204 = vmatpush1.msra.mxu0 0.0
    %1205 = vmatprep.subr.mxu0 0.0
    %1206 = vmatpush1.msra.mxu0 0.0
    %1207 = vmatprep.subr.mxu0 0.0
    %1208 = vmatpush1.msra.mxu0 0.0
    %1209 = vmatprep.subr.mxu0 0.0
    %1210 = vmatpush1.msra.mxu0 0.0
    %1211 = vmatprep.subr.mxu0 0.0
    %1212 = vmatpush1.msra.mxu0 0.0
    %1213 = vmatprep.subr.mxu0 0.0
    %1214 = vmatpush1.msra.mxu0 0.0
    %1215 = vmatprep.subr.mxu0 0.0
    %1216 = vmatpush1.msra.mxu0 0.0
    %1217 = vmatprep.subr.mxu0 0.0
    %1218 = vmatpush1.msra.mxu0 0.0
    %1219 = vmatprep.subr.mxu0 0.0
    %1220 = vmatpush1.msra.mxu0 0.0
    %1221 = vmatprep.subr.mxu0 0.0
    %1222 = vmatpush1.msra.mxu0 0.0
    %1223 = vmatprep.subr.mxu0 0.0
    %1224 = vmatpush1.msra.mxu0 0.0
    %1225 = vmatprep.subr.mxu0 0.0
    %1226 = vmatpush1.msra.mxu0 0.0
    %1227 = vmatprep.subr.mxu0 0.0
    %1228 = vmatpush1.msra.mxu0 0.0
    %1229 = vmatprep.subr.mxu0 0.0
    %1230 = vmatpush1.msra.mxu0 0.0
    %1231 = vmatprep.subr.mxu0 0.0
    %1232 = vmatpush1.msra.mxu0 0.0
    %1233 = vmatprep.subr.mxu0 0.0
    %1234 = vmatpush1.msra.mxu0 0.0
    %1235 = vmatprep.subr.mxu0 0.0
    %1236 = vmatpush1.msra.mxu0 0.0
    %1237 = vmatprep.subr.mxu0 0.0
    %1238 = vmatpush1.msra.mxu0 0.0
    %1239 = vmatprep.subr.mxu0 0.0
    %1240 = vmatpush1.msra.mxu0 0.0
    %1241 = vmatprep.subr.mxu0 0.0
    %1242 = vmatpush1.msra.mxu0 0.0
    %1243 = vmatprep.subr.mxu0 0.0
    %1244 = vmatpush1.msra.mxu0 0.0
    %1245 = vmatprep.subr.mxu0 0.0
    %1246 = vmatpush1.msra.mxu0 0.0
    %1247 = vmatprep.subr.mxu0 0.0
    %1248 = vmatpush1.msra.mxu0 0.0
    %1249 = vmatprep.subr.mxu0 0.0
    %1250 = vmatpush1.msra.mxu0 0.0
    %1251 = vmatprep.mubr.f32.mxu0 0.0
    %1252 = vmatmul.mubr.f32.gmra.mrb[0].mxu0 %v1115
    %v1253 = vpop.f32.mrb[0].mxu0
    %v1254 = vadd.f32 0.0, %v1253
    %v1255 = vpop.f32.mrb[0].mxu0
    %1256 = vdwg.mxu0
    %v1257 = vadd.f32 %v210, %v1184
    %v1258 = vxor.u32 %v1257, 2147483648
    %v1259 = vmul.f32 %v1258, 1.442695
    %v1260 = vpow.pop %v1259
    %v1261 = vadd.f32 %v1260, 1.0
    %v1262 = vrcp.pop %v1261
    %v1263 = vmul.f32 1.0, %v1262
    %v1264 = vmul.f32 %v1263, %v1254
    %v1265 = vadd.f32 %v333, %v1264
    %v1266 = vtanh.pop %v1265
    %v1267 = vmul.f32 %v870, %v1266
    %v1268 = vmul.f32 %v878, %v1113
    %v1269 = vadd.f32 %v1267, %v1268
    %v1271 = vsel %vm113, %v1269, 0
    %1273 = vmatprep.subr.mxu0 0.0
    %1274 = vmatpush1.msra.mxu0 %v58
    %1275 = vmatprep.subr.mxu0 0.0
    %1276 = vmatpush1.msra.mxu0 %v59
    %1277 = vmatprep.subr.mxu0 0.0
    %1278 = vmatpush1.msra.mxu0 %v60
    %1279 = vmatprep.subr.mxu0 0.0
    %1280 = vmatpush1.msra.mxu0 %v61
    %1281 = vmatprep.subr.mxu0 0.0
    %1282 = vmatpush1.msra.mxu0 0.0
    %1283 = vmatprep.subr.mxu0 0.0
    %1284 = vmatpush1.msra.mxu0 0.0
    %1285 = vmatprep.subr.mxu0 0.0
    %1286 = vmatpush1.msra.mxu0 0.0
    %1287 = vmatprep.subr.mxu0 0.0
    %1288 = vmatpush1.msra.mxu0 0.0
    %1289 = vmatprep.subr.mxu0 0.0
    %1290 = vmatpush1.msra.mxu0 0.0
    %1291 = vmatprep.subr.mxu0 0.0
    %1292 = vmatpush1.msra.mxu0 0.0
    %1293 = vmatprep.subr.mxu0 0.0
    %1294 = vmatpush1.msra.mxu0 0.0
    %1295 = vmatprep.subr.mxu0 0.0
    %1296 = vmatpush1.msra.mxu0 0.0
    %1297 = vmatprep.subr.mxu0 0.0
    %1298 = vmatpush1.msra.mxu0 0.0
    %1299 = vmatprep.subr.mxu0 0.0
    %1300 = vmatpush1.msra.mxu0 0.0
    %1301 = vmatprep.subr.mxu0 0.0
    %1302 = vmatpush1.msra.mxu0 0.0
    %1303 = vmatprep.subr.mxu0 0.0
    %1304 = vmatpush1.msra.mxu0 0.0
    %1305 = vmatprep.subr.mxu0 0.0
    %1306 = vmatpush1.msra.mxu0 0.0
    %1307 = vmatprep.subr.mxu0 0.0
    %1308 = vmatpush1.msra.mxu0 0.0
    %1309 = vmatprep.subr.mxu0 0.0
    %1310 = vmatpush1.msra.mxu0 0.0
    %1311 = vmatprep.subr.mxu0 0.0
    %1312 = vmatpush1.msra.mxu0 0.0
    %1313 = vmatprep.subr.mxu0 0.0
    %1314 = vmatpush1.msra.mxu0 0.0
    %1315 = vmatprep.subr.mxu0 0.0
    %1316 = vmatpush1.msra.mxu0 0.0
    %1317 = vmatprep.subr.mxu0 0.0
    %1318 = vmatpush1.msra.mxu0 0.0
    %1319 = vmatprep.subr.mxu0 0.0
    %1320 = vmatpush1.msra.mxu0 0.0
    %1321 = vmatprep.subr.mxu0 0.0
    %1322 = vmatpush1.msra.mxu0 0.0
    %1323 = vmatprep.subr.mxu0 0.0
    %1324 = vmatpush1.msra.mxu0 0.0
    %1325 = vmatprep.subr.mxu0 0.0
    %1326 = vmatpush1.msra.mxu0 0.0
    %1327 = vmatprep.subr.mxu0 0.0
    %1328 = vmatpush1.msra.mxu0 0.0
    %1329 = vmatprep.subr.mxu0 0.0
    %1330 = vmatpush1.msra.mxu0 0.0
    %1331 = vmatprep.subr.mxu0 0.0
    %1332 = vmatpush1.msra.mxu0 0.0
    %1333 = vmatprep.subr.mxu0 0.0
    %1334 = vmatpush1.msra.mxu0 0.0
    %1335 = vmatprep.subr.mxu0 0.0
    %1336 = vmatpush1.msra.mxu0 0.0
    %1337 = vmatprep.mubr.f32.mxu0 0.0
    %1338 = vmatmul.mubr.f32.gmra.mrb[0].mxu0 %v1271
    %v1339 = vpop.f32.mrb[0].mxu0
    %v1340 = vadd.f32 0.0, %v1339
    %v1341 = vpop.f32.mrb[0].mxu0
    %1342 = vdwg.mxu0
    %1343 = vmatprep.subr.mxu0 0.0
    %1344 = vmatpush1.msra.mxu0 %v62
    %1345 = vmatprep.subr.mxu0 0.0
    %1346 = vmatpush1.msra.mxu0 %v63
    %1347 = vmatprep.subr.mxu0 0.0
    %1348 = vmatpush1.msra.mxu0 %v64
    %1349 = vmatprep.subr.mxu0 0.0
    %1350 = vmatpush1.msra.mxu0 %v65
    %1351 = vmatprep.subr.mxu0 0.0
    %1352 = vmatpush1.msra.mxu0 0.0
    %1353 = vmatprep.subr.mxu0 0.0
    %1354 = vmatpush1.msra.mxu0 0.0
    %1355 = vmatprep.subr.mxu0 0.0
    %1356 = vmatpush1.msra.mxu0 0.0
    %1357 = vmatprep.subr.mxu0 0.0
    %1358 = vmatpush1.msra.mxu0 0.0
    %1359 = vmatprep.subr.mxu0 0.0
    %1360 = vmatpush1.msra.mxu0 0.0
    %1361 = vmatprep.subr.mxu0 0.0
    %1362 = vmatpush1.msra.mxu0 0.0
    %1363 = vmatprep.subr.mxu0 0.0
    %1364 = vmatpush1.msra.mxu0 0.0
    %1365 = vmatprep.subr.mxu0 0.0
    %1366 = vmatpush1.msra.mxu0 0.0
    %1367 = vmatprep.subr.mxu0 0.0
    %1368 = vmatpush1.msra.mxu0 0.0
    %1369 = vmatprep.subr.mxu0 0.0
    %1370 = vmatpush1.msra.mxu0 0.0
    %1371 = vmatprep.subr.mxu0 0.0
    %1372 = vmatpush1.msra.mxu0 0.0
    %1373 = vmatprep.subr.mxu0 0.0
    %1374 = vmatpush1.msra.mxu0 0.0
    %1375 = vmatprep.subr.mxu0 0.0
    %1376 = vmatpush1.msra.mxu0 0.0
    %1377 = vmatprep.subr.mxu0 0.0
    %1378 = vmatpush1.msra.mxu0 0.0
    %1379 = vmatprep.subr.mxu0 0.0
    %1380 = vmatpush1.msra.mxu0 0.0
    %1381 = vmatprep.subr.mxu0 0.0
    %1382 = vmatpush1.msra.mxu0 0.0
    %1383 = vmatprep.subr.mxu0 0.0
    %1384 = vmatpush1.msra.mxu0 0.0
    %1385 = vmatprep.subr.mxu0 0.0
    %1386 = vmatpush1.msra.mxu0 0.0
    %1387 = vmatprep.subr.mxu0 0.0
    %1388 = vmatpush1.msra.mxu0 0.0
    %1389 = vmatprep.subr.mxu0 0.0
    %1390 = vmatpush1.msra.mxu0 0.0
    %1391 = vmatprep.subr.mxu0 0.0
    %1392 = vmatpush1.msra.mxu0 0.0
    %1393 = vmatprep.subr.mxu0 0.0
    %1394 = vmatpush1.msra.mxu0 0.0
    %1395 = vmatprep.subr.mxu0 0.0
    %1396 = vmatpush1.msra.mxu0 0.0
    %1397 = vmatprep.subr.mxu0 0.0
    %1398 = vmatpush1.msra.mxu0 0.0
    %1399 = vmatprep.subr.mxu0 0.0
    %1400 = vmatpush1.msra.mxu0 0.0
    %1401 = vmatprep.subr.mxu0 0.0
    %1402 = vmatpush1.msra.mxu0 0.0
    %1403 = vmatprep.subr.mxu0 0.0
    %1404 = vmatpush1.msra.mxu0 0.0
    %1405 = vmatprep.subr.mxu0 0.0
    %1406 = vmatpush1.msra.mxu0 0.0
    %1407 = vmatprep.mubr.f32.mxu0 0.0
    %1408 = vmatmul.mubr.f32.gmra.mrb[0].mxu0 %v1271
    %v1409 = vpop.f32.mrb[0].mxu0
    %v1410 = vadd.f32 0.0, %v1409
    %v1411 = vpop.f32.mrb[0].mxu0
    %1412 = vdwg.mxu0
    %v1413 = vadd.f32 %v209, %v1340
    %v1414 = vxor.u32 %v1413, 2147483648
    %v1415 = vmul.f32 %v1414, 1.442695
    %v1416 = vpow.pop %v1415
    %v1417 = vadd.f32 %v1416, 1.0
    %v1418 = vrcp.pop %v1417
    %v1419 = vmul.f32 1.0, %v1418
    %v1420 = vmul.f32 %v1419, %v1410
    %v1421 = vadd.f32 %v332, %v1420
    %v1422 = vtanh.pop %v1421
    %v1423 = vmul.f32 %v871, %v1422
    %v1424 = vmul.f32 %v879, %v1269
    %v1425 = vadd.f32 %v1423, %v1424
    %v1427 = vsel %vm113, %v1425, 0
    %1429 = vmatprep.subr.mxu0 0.0
    %1430 = vmatpush1.msra.mxu0 %v58
    %1431 = vmatprep.subr.mxu0 0.0
    %1432 = vmatpush1.msra.mxu0 %v59
    %1433 = vmatprep.subr.mxu0 0.0
    %1434 = vmatpush1.msra.mxu0 %v60
    %1435 = vmatprep.subr.mxu0 0.0
    %1436 = vmatpush1.msra.mxu0 %v61
    %1437 = vmatprep.subr.mxu0 0.0
    %1438 = vmatpush1.msra.mxu0 0.0
    %1439 = vmatprep.subr.mxu0 0.0
    %1440 = vmatpush1.msra.mxu0 0.0
    %1441 = vmatprep.subr.mxu0 0.0
    %1442 = vmatpush1.msra.mxu0 0.0
    %1443 = vmatprep.subr.mxu0 0.0
    %1444 = vmatpush1.msra.mxu0 0.0
    %1445 = vmatprep.subr.mxu0 0.0
    %1446 = vmatpush1.msra.mxu0 0.0
    %1447 = vmatprep.subr.mxu0 0.0
    %1448 = vmatpush1.msra.mxu0 0.0
    %1449 = vmatprep.subr.mxu0 0.0
    %1450 = vmatpush1.msra.mxu0 0.0
    %1451 = vmatprep.subr.mxu0 0.0
    %1452 = vmatpush1.msra.mxu0 0.0
    %1453 = vmatprep.subr.mxu0 0.0
    %1454 = vmatpush1.msra.mxu0 0.0
    %1455 = vmatprep.subr.mxu0 0.0
    %1456 = vmatpush1.msra.mxu0 0.0
    %1457 = vmatprep.subr.mxu0 0.0
    %1458 = vmatpush1.msra.mxu0 0.0
    %1459 = vmatprep.subr.mxu0 0.0
    %1460 = vmatpush1.msra.mxu0 0.0
    %1461 = vmatprep.subr.mxu0 0.0
    %1462 = vmatpush1.msra.mxu0 0.0
    %1463 = vmatprep.subr.mxu0 0.0
    %1464 = vmatpush1.msra.mxu0 0.0
    %1465 = vmatprep.subr.mxu0 0.0
    %1466 = vmatpush1.msra.mxu0 0.0
    %1467 = vmatprep.subr.mxu0 0.0
    %1468 = vmatpush1.msra.mxu0 0.0
    %1469 = vmatprep.subr.mxu0 0.0
    %1470 = vmatpush1.msra.mxu0 0.0
    %1471 = vmatprep.subr.mxu0 0.0
    %1472 = vmatpush1.msra.mxu0 0.0
    %1473 = vmatprep.subr.mxu0 0.0
    %1474 = vmatpush1.msra.mxu0 0.0
    %1475 = vmatprep.subr.mxu0 0.0
    %1476 = vmatpush1.msra.mxu0 0.0
    %1477 = vmatprep.subr.mxu0 0.0
    %1478 = vmatpush1.msra.mxu0 0.0
    %1479 = vmatprep.subr.mxu0 0.0
    %1480 = vmatpush1.msra.mxu0 0.0
    %1481 = vmatprep.subr.mxu0 0.0
    %1482 = vmatpush1.msra.mxu0 0.0
    %1483 = vmatprep.subr.mxu0 0.0
    %1484 = vmatpush1.msra.mxu0 0.0
    %1485 = vmatprep.subr.mxu0 0.0
    %1486 = vmatpush1.msra.mxu0 0.0
    %1487 = vmatprep.subr.mxu0 0.0
    %1488 = vmatpush1.msra.mxu0 0.0
    %1489 = vmatprep.subr.mxu0 0.0
    %1490 = vmatpush1.msra.mxu0 0.0
    %1491 = vmatprep.subr.mxu0 0.0
    %1492 = vmatpush1.msra.mxu0 0.0
    %1493 = vmatprep.mubr.f32.mxu0 0.0
    %1494 = vmatmul.mubr.f32.gmra.mrb[0].mxu0 %v1427
    %v1495 = vpop.f32.mrb[0].mxu0
    %v1496 = vadd.f32 0.0, %v1495
    %v1497 = vpop.f32.mrb[0].mxu0
    %1498 = vdwg.mxu0
    %1499 = vmatprep.subr.mxu0 0.0
    %1500 = vmatpush1.msra.mxu0 %v62
    %1501 = vmatprep.subr.mxu0 0.0
    %1502 = vmatpush1.msra.mxu0 %v63
    %1503 = vmatprep.subr.mxu0 0.0
    %1504 = vmatpush1.msra.mxu0 %v64
    %1505 = vmatprep.subr.mxu0 0.0
    %1506 = vmatpush1.msra.mxu0 %v65
    %1507 = vmatprep.subr.mxu0 0.0
    %1508 = vmatpush1.msra.mxu0 0.0
    %1509 = vmatprep.subr.mxu0 0.0
    %1510 = vmatpush1.msra.mxu0 0.0
    %1511 = vmatprep.subr.mxu0 0.0
    %1512 = vmatpush1.msra.mxu0 0.0
    %1513 = vmatprep.subr.mxu0 0.0
    %1514 = vmatpush1.msra.mxu0 0.0
    %1515 = vmatprep.subr.mxu0 0.0
    %1516 = vmatpush1.msra.mxu0 0.0
    %1517 = vmatprep.subr.mxu0 0.0
    %1518 = vmatpush1.msra.mxu0 0.0
    %1519 = vmatprep.subr.mxu0 0.0
    %1520 = vmatpush1.msra.mxu0 0.0
    %1521 = vmatprep.subr.mxu0 0.0
    %1522 = vmatpush1.msra.mxu0 0.0
    %1523 = vmatprep.subr.mxu0 0.0
    %1524 = vmatpush1.msra.mxu0 0.0
    %1525 = vmatprep.subr.mxu0 0.0
    %1526 = vmatpush1.msra.mxu0 0.0
    %1527 = vmatprep.subr.mxu0 0.0
    %1528 = vmatpush1.msra.mxu0 0.0
    %1529 = vmatprep.subr.mxu0 0.0
    %1530 = vmatpush1.msra.mxu0 0.0
    %1531 = vmatprep.subr.mxu0 0.0
    %1532 = vmatpush1.msra.mxu0 0.0
    %1533 = vmatprep.subr.mxu0 0.0
    %1534 = vmatpush1.msra.mxu0 0.0
    %1535 = vmatprep.subr.mxu0 0.0
    %1536 = vmatpush1.msra.mxu0 0.0
    %1537 = vmatprep.subr.mxu0 0.0
    %1538 = vmatpush1.msra.mxu0 0.0
    %1539 = vmatprep.subr.mxu0 0.0
    %1540 = vmatpush1.msra.mxu0 0.0
    %1541 = vmatprep.subr.mxu0 0.0
    %1542 = vmatpush1.msra.mxu0 0.0
    %1543 = vmatprep.subr.mxu0 0.0
    %1544 = vmatpush1.msra.mxu0 0.0
    %1545 = vmatprep.subr.mxu0 0.0
    %1546 = vmatpush1.msra.mxu0 0.0
    %1547 = vmatprep.subr.mxu0 0.0
    %1548 = vmatpush1.msra.mxu0 0.0
    %1549 = vmatprep.subr.mxu0 0.0
    %1550 = vmatpush1.msra.mxu0 0.0
    %1551 = vmatprep.subr.mxu0 0.0
    %1552 = vmatpush1.msra.mxu0 0.0
    %1553 = vmatprep.subr.mxu0 0.0
    %1554 = vmatpush1.msra.mxu0 0.0
    %1555 = vmatprep.subr.mxu0 0.0
    %1556 = vmatpush1.msra.mxu0 0.0
    %1557 = vmatprep.subr.mxu0 0.0
    %1558 = vmatpush1.msra.mxu0 0.0
    %1559 = vmatprep.subr.mxu0 0.0
    %1560 = vmatpush1.msra.mxu0 0.0
    %1561 = vmatprep.subr.mxu0 0.0
    %1562 = vmatpush1.msra.mxu0 0.0
    %1563 = vmatprep.mubr.f32.mxu0 0.0
    %1564 = vmatmul.mubr.f32.gmra.mrb[0].mxu0 %v1427
    %v1565 = vpop.f32.mrb[0].mxu0
    %v1566 = vadd.f32 0.0, %v1565
    %v1567 = vpop.f32.mrb[0].mxu0
    %1568 = vdwg.mxu0
    %v1569 = vadd.f32 %v211, %v1496
    %v1570 = vxor.u32 %v1569, 2147483648
    %v1571 = vmul.f32 %v1570, 1.442695
    %v1572 = vpow.pop %v1571
    %v1573 = vadd.f32 %v1572, 1.0
    %v1574 = vrcp.pop %v1573
    %v1575 = vmul.f32 1.0, %v1574
    %v1576 = vmul.f32 %v1575, %v1566
    %v1577 = vadd.f32 %v334, %v1576
    %v1578 = vtanh.pop %v1577
    %v1579 = vmul.f32 %v872, %v1578
    %v1580 = vmul.f32 %v880, %v1425
    %v1581 = vadd.f32 %v1579, %v1580
    %v1583 = vsel %vm113, %v1581, 0
    %1585 = vmatprep.subr.mxu0 0.0
    %1586 = vmatpush1.msra.mxu0 %v58
    %1587 = vmatprep.subr.mxu0 0.0
    %1588 = vmatpush1.msra.mxu0 %v59
    %1589 = vmatprep.subr.mxu0 0.0
    %1590 = vmatpush1.msra.mxu0 %v60
    %1591 = vmatprep.subr.mxu0 0.0
    %1592 = vmatpush1.msra.mxu0 %v61
    %1593 = vmatprep.subr.mxu0 0.0
    %1594 = vmatpush1.msra.mxu0 0.0
    %1595 = vmatprep.subr.mxu0 0.0
    %1596 = vmatpush1.msra.mxu0 0.0
    %1597 = vmatprep.subr.mxu0 0.0
    %1598 = vmatpush1.msra.mxu0 0.0
    %1599 = vmatprep.subr.mxu0 0.0
    %1600 = vmatpush1.msra.mxu0 0.0
    %1601 = vmatprep.subr.mxu0 0.0
    %1602 = vmatpush1.msra.mxu0 0.0
    %1603 = vmatprep.subr.mxu0 0.0
    %1604 = vmatpush1.msra.mxu0 0.0
    %1605 = vmatprep.subr.mxu0 0.0
    %1606 = vmatpush1.msra.mxu0 0.0
    %1607 = vmatprep.subr.mxu0 0.0
    %1608 = vmatpush1.msra.mxu0 0.0
    %1609 = vmatprep.subr.mxu0 0.0
    %1610 = vmatpush1.msra.mxu0 0.0
    %1611 = vmatprep.subr.mxu0 0.0
    %1612 = vmatpush1.msra.mxu0 0.0
    %1613 = vmatprep.subr.mxu0 0.0
    %1614 = vmatpush1.msra.mxu0 0.0
    %1615 = vmatprep.subr.mxu0 0.0
    %1616 = vmatpush1.msra.mxu0 0.0
    %1617 = vmatprep.subr.mxu0 0.0
    %1618 = vmatpush1.msra.mxu0 0.0
    %1619 = vmatprep.subr.mxu0 0.0
    %1620 = vmatpush1.msra.mxu0 0.0
    %1621 = vmatprep.subr.mxu0 0.0
    %1622 = vmatpush1.msra.mxu0 0.0
    %1623 = vmatprep.subr.mxu0 0.0
    %1624 = vmatpush1.msra.mxu0 0.0
    %1625 = vmatprep.subr.mxu0 0.0
    %1626 = vmatpush1.msra.mxu0 0.0
    %1627 = vmatprep.subr.mxu0 0.0
    %1628 = vmatpush1.msra.mxu0 0.0
    %1629 = vmatprep.subr.mxu0 0.0
    %1630 = vmatpush1.msra.mxu0 0.0
    %1631 = vmatprep.subr.mxu0 0.0
    %1632 = vmatpush1.msra.mxu0 0.0
    %1633 = vmatprep.subr.mxu0 0.0
    %1634 = vmatpush1.msra.mxu0 0.0
    %1635 = vmatprep.subr.mxu0 0.0
    %1636 = vmatpush1.msra.mxu0 0.0
    %1637 = vmatprep.subr.mxu0 0.0
    %1638 = vmatpush1.msra.mxu0 0.0
    %1639 = vmatprep.subr.mxu0 0.0
    %1640 = vmatpush1.msra.mxu0 0.0
    %1641 = vmatprep.subr.mxu0 0.0
    %1642 = vmatpush1.msra.mxu0 0.0
    %1643 = vmatprep.subr.mxu0 0.0
    %1644 = vmatpush1.msra.mxu0 0.0
    %1645 = vmatprep.subr.mxu0 0.0
    %1646 = vmatpush1.msra.mxu0 0.0
    %1647 = vmatprep.subr.mxu0 0.0
    %1648 = vmatpush1.msra.mxu0 0.0
    %1649 = vmatprep.mubr.f32.mxu0 0.0
    %1650 = vmatmul.mubr.f32.gmra.mrb[0].mxu0 %v1583
    %v1651 = vpop.f32.mrb[0].mxu0
    %v1652 = vadd.f32 0.0, %v1651
    %v1653 = vpop.f32.mrb[0].mxu0
    %1654 = vdwg.mxu0
    %1655 = vmatprep.subr.mxu0 0.0
    %1656 = vmatpush1.msra.mxu0 %v62
    %1657 = vmatprep.subr.mxu0 0.0
    %1658 = vmatpush1.msra.mxu0 %v63
    %1659 = vmatprep.subr.mxu0 0.0
    %1660 = vmatpush1.msra.mxu0 %v64
    %1661 = vmatprep.subr.mxu0 0.0
    %1662 = vmatpush1.msra.mxu0 %v65
    %1663 = vmatprep.subr.mxu0 0.0
    %1664 = vmatpush1.msra.mxu0 0.0
    %1665 = vmatprep.subr.mxu0 0.0
    %1666 = vmatpush1.msra.mxu0 0.0
    %1667 = vmatprep.subr.mxu0 0.0
    %1668 = vmatpush1.msra.mxu0 0.0
    %1669 = vmatprep.subr.mxu0 0.0
    %1670 = vmatpush1.msra.mxu0 0.0
    %1671 = vmatprep.subr.mxu0 0.0
    %1672 = vmatpush1.msra.mxu0 0.0
    %1673 = vmatprep.subr.mxu0 0.0
    %1674 = vmatpush1.msra.mxu0 0.0
    %1675 = vmatprep.subr.mxu0 0.0
    %1676 = vmatpush1.msra.mxu0 0.0
    %1677 = vmatprep.subr.mxu0 0.0
    %1678 = vmatpush1.msra.mxu0 0.0
    %1679 = vmatprep.subr.mxu0 0.0
    %1680 = vmatpush1.msra.mxu0 0.0
    %1681 = vmatprep.subr.mxu0 0.0
    %1682 = vmatpush1.msra.mxu0 0.0
    %1683 = vmatprep.subr.mxu0 0.0
    %1684 = vmatpush1.msra.mxu0 0.0
    %1685 = vmatprep.subr.mxu0 0.0
    %1686 = vmatpush1.msra.mxu0 0.0
    %1687 = vmatprep.subr.mxu0 0.0
    %1688 = vmatpush1.msra.mxu0 0.0
    %1689 = vmatprep.subr.mxu0 0.0
    %1690 = vmatpush1.msra.mxu0 0.0
    %1691 = vmatprep.subr.mxu0 0.0
    %1692 = vmatpush1.msra.mxu0 0.0
    %1693 = vmatprep.subr.mxu0 0.0
    %1694 = vmatpush1.msra.mxu0 0.0
    %1695 = vmatprep.subr.mxu0 0.0
    %1696 = vmatpush1.msra.mxu0 0.0
    %1697 = vmatprep.subr.mxu0 0.0
    %1698 = vmatpush1.msra.mxu0 0.0
    %1699 = vmatprep.subr.mxu0 0.0
    %1700 = vmatpush1.msra.mxu0 0.0
    %1701 = vmatprep.subr.mxu0 0.0
    %1702 = vmatpush1.msra.mxu0 0.0
    %1703 = vmatprep.subr.mxu0 0.0
    %1704 = vmatpush1.msra.mxu0 0.0
    %1705 = vmatprep.subr.mxu0 0.0
    %1706 = vmatpush1.msra.mxu0 0.0
    %1707 = vmatprep.subr.mxu0 0.0
    %1708 = vmatpush1.msra.mxu0 0.0
    %1709 = vmatprep.subr.mxu0 0.0
    %1710 = vmatpush1.msra.mxu0 0.0
    %1711 = vmatprep.subr.mxu0 0.0
    %1712 = vmatpush1.msra.mxu0 0.0
    %1713 = vmatprep.subr.mxu0 0.0
    %1714 = vmatpush1.msra.mxu0 0.0
    %1715 = vmatprep.subr.mxu0 0.0
    %1716 = vmatpush1.msra.mxu0 0.0
    %1717 = vmatprep.subr.mxu0 0.0
    %1718 = vmatpush1.msra.mxu0 0.0
    %1719 = vmatprep.mubr.f32.mxu0 0.0
    %1720 = vmatmul.mubr.f32.gmra.mrb[0].mxu0 %v1583
    %v1721 = vpop.f32.mrb[0].mxu0
    %v1722 = vadd.f32 0.0, %v1721
    %v1723 = vpop.f32.mrb[0].mxu0
    %1724 = vdwg.mxu0
    %v1725 = vadd.f32 %v219, %v1652
    %v1726 = vxor.u32 %v1725, 2147483648
    %v1727 = vmul.f32 %v1726, 1.442695
    %v1728 = vpow.pop %v1727
    %v1729 = vadd.f32 %v1728, 1.0
    %v1730 = vrcp.pop %v1729
    %v1731 = vmul.f32 1.0, %v1730
    %v1732 = vmul.f32 %v1731, %v1722
    %v1733 = vadd.f32 %v342, %v1732
    %v1734 = vtanh.pop %v1733
    %v1735 = vmul.f32 %v873, %v1734
    %v1736 = vmul.f32 %v881, %v1581
    %v1737 = vadd.f32 %v1735, %v1736
    %v1739 = vsel %vm113, %v1737, 0
    %1741 = vmatprep.subr.mxu0 0.0
    %1742 = vmatpush1.msra.mxu0 %v58
    %1743 = vmatprep.subr.mxu0 0.0
    %1744 = vmatpush1.msra.mxu0 %v59
    %1745 = vmatprep.subr.mxu0 0.0
    %1746 = vmatpush1.msra.mxu0 %v60
    %1747 = vmatprep.subr.mxu0 0.0
    %1748 = vmatpush1.msra.mxu0 %v61
    %1749 = vmatprep.subr.mxu0 0.0
    %1750 = vmatpush1.msra.mxu0 0.0
    %1751 = vmatprep.subr.mxu0 0.0
    %1752 = vmatpush1.msra.mxu0 0.0
    %1753 = vmatprep.subr.mxu0 0.0
    %1754 = vmatpush1.msra.mxu0 0.0
    %1755 = vmatprep.subr.mxu0 0.0
    %1756 = vmatpush1.msra.mxu0 0.0
    %1757 = vmatprep.subr.mxu0 0.0
    %1758 = vmatpush1.msra.mxu0 0.0
    %1759 = vmatprep.subr.mxu0 0.0
    %1760 = vmatpush1.msra.mxu0 0.0
    %1761 = vmatprep.subr.mxu0 0.0
    %1762 = vmatpush1.msra.mxu0 0.0
    %1763 = vmatprep.subr.mxu0 0.0
    %1764 = vmatpush1.msra.mxu0 0.0
    %1765 = vmatprep.subr.mxu0 0.0
    %1766 = vmatpush1.msra.mxu0 0.0
    %1767 = vmatprep.subr.mxu0 0.0
    %1768 = vmatpush1.msra.mxu0 0.0
    %1769 = vmatprep.subr.mxu0 0.0
    %1770 = vmatpush1.msra.mxu0 0.0
    %1771 = vmatprep.subr.mxu0 0.0
    %1772 = vmatpush1.msra.mxu0 0.0
    %1773 = vmatprep.subr.mxu0 0.0
    %1774 = vmatpush1.msra.mxu0 0.0
    %1775 = vmatprep.subr.mxu0 0.0
    %1776 = vmatpush1.msra.mxu0 0.0
    %1777 = vmatprep.subr.mxu0 0.0
    %1778 = vmatpush1.msra.mxu0 0.0
    %1779 = vmatprep.subr.mxu0 0.0
    %1780 = vmatpush1.msra.mxu0 0.0
    %1781 = vmatprep.subr.mxu0 0.0
    %1782 = vmatpush1.msra.mxu0 0.0
    %1783 = vmatprep.subr.mxu0 0.0
    %1784 = vmatpush1.msra.mxu0 0.0
    %1785 = vmatprep.subr.mxu0 0.0
    %1786 = vmatpush1.msra.mxu0 0.0
    %1787 = vmatprep.subr.mxu0 0.0
    %1788 = vmatpush1.msra.mxu0 0.0
    %1789 = vmatprep.subr.mxu0 0.0
    %1790 = vmatpush1.msra.mxu0 0.0
    %1791 = vmatprep.subr.mxu0 0.0
    %1792 = vmatpush1.msra.mxu0 0.0
    %1793 = vmatprep.subr.mxu0 0.0
    %1794 = vmatpush1.msra.mxu0 0.0
    %1795 = vmatprep.subr.mxu0 0.0
    %1796 = vmatpush1.msra.mxu0 0.0
    %1797 = vmatprep.subr.mxu0 0.0
    %1798 = vmatpush1.msra.mxu0 0.0
    %1799 = vmatprep.subr.mxu0 0.0
    %1800 = vmatpush1.msra.mxu0 0.0
    %1801 = vmatprep.subr.mxu0 0.0
    %1802 = vmatpush1.msra.mxu0 0.0
    %1803 = vmatprep.subr.mxu0 0.0
    %1804 = vmatpush1.msra.mxu0 0.0
    %1805 = vmatprep.mubr.f32.mxu0 0.0
    %1806 = vmatmul.mubr.f32.gmra.mrb[0].mxu0 %v1739
    %v1807 = vpop.f32.mrb[0].mxu0
    %v1808 = vadd.f32 0.0, %v1807
    %v1809 = vpop.f32.mrb[0].mxu0
    %1810 = vdwg.mxu0
    %1811 = vmatprep.subr.mxu0 0.0
    %1812 = vmatpush1.msra.mxu0 %v62
    %1813 = vmatprep.subr.mxu0 0.0
    %1814 = vmatpush1.msra.mxu0 %v63
    %1815 = vmatprep.subr.mxu0 0.0
    %1816 = vmatpush1.msra.mxu0 %v64
    %1817 = vmatprep.subr.mxu0 0.0
    %1818 = vmatpush1.msra.mxu0 %v65
    %1819 = vmatprep.subr.mxu0 0.0
    %1820 = vmatpush1.msra.mxu0 0.0
    %1821 = vmatprep.subr.mxu0 0.0
    %1822 = vmatpush1.msra.mxu0 0.0
    %1823 = vmatprep.subr.mxu0 0.0
    %1824 = vmatpush1.msra.mxu0 0.0
    %1825 = vmatprep.subr.mxu0 0.0
    %1826 = vmatpush1.msra.mxu0 0.0
    %1827 = vmatprep.subr.mxu0 0.0
    %1828 = vmatpush1.msra.mxu0 0.0
    %1829 = vmatprep.subr.mxu0 0.0
    %1830 = vmatpush1.msra.mxu0 0.0
    %1831 = vmatprep.subr.mxu0 0.0
    %1832 = vmatpush1.msra.mxu0 0.0
    %1833 = vmatprep.subr.mxu0 0.0
    %1834 = vmatpush1.msra.mxu0 0.0
    %1835 = vmatprep.subr.mxu0 0.0
    %1836 = vmatpush1.msra.mxu0 0.0
    %1837 = vmatprep.subr.mxu0 0.0
    %1838 = vmatpush1.msra.mxu0 0.0
    %1839 = vmatprep.subr.mxu0 0.0
    %1840 = vmatpush1.msra.mxu0 0.0
    %1841 = vmatprep.subr.mxu0 0.0
    %1842 = vmatpush1.msra.mxu0 0.0
    %1843 = vmatprep.subr.mxu0 0.0
    %1844 = vmatpush1.msra.mxu0 0.0
    %1845 = vmatprep.subr.mxu0 0.0
    %1846 = vmatpush1.msra.mxu0 0.0
    %1847 = vmatprep.subr.mxu0 0.0
    %1848 = vmatpush1.msra.mxu0 0.0
    %1849 = vmatprep.subr.mxu0 0.0
    %1850 = vmatpush1.msra.mxu0 0.0
    %1851 = vmatprep.subr.mxu0 0.0
    %1852 = vmatpush1.msra.mxu0 0.0
    %1853 = vmatprep.subr.mxu0 0.0
    %1854 = vmatpush1.msra.mxu0 0.0
    %1855 = vmatprep.subr.mxu0 0.0
    %1856 = vmatpush1.msra.mxu0 0.0
    %1857 = vmatprep.subr.mxu0 0.0
    %1858 = vmatpush1.msra.mxu0 0.0
    %1859 = vmatprep.subr.mxu0 0.0
    %1860 = vmatpush1.msra.mxu0 0.0
    %1861 = vmatprep.subr.mxu0 0.0
    %1862 = vmatpush1.msra.mxu0 0.0
    %1863 = vmatprep.subr.mxu0 0.0
    %1864 = vmatpush1.msra.mxu0 0.0
    %1865 = vmatprep.subr.mxu0 0.0
    %1866 = vmatpush1.msra.mxu0 0.0
    %1867 = vmatprep.subr.mxu0 0.0
    %1868 = vmatpush1.msra.mxu0 0.0
    %1869 = vmatprep.subr.mxu0 0.0
    %1870 = vmatpush1.msra.mxu0 0.0
    %1871 = vmatprep.subr.mxu0 0.0
    %1872 = vmatpush1.msra.mxu0 0.0
    %1873 = vmatprep.subr.mxu0 0.0
    %1874 = vmatpush1.msra.mxu0 0.0
    %1875 = vmatprep.mubr.f32.mxu0 0.0
    %1876 = vmatmul.mubr.f32.gmra.mrb[0].mxu0 %v1739
    %v1877 = vpop.f32.mrb[0].mxu0
    %v1878 = vadd.f32 0.0, %v1877
    %v1879 = vpop.f32.mrb[0].mxu0
    %1880 = vdwg.mxu0
    %v1881 = vadd.f32 %v227, %v1808
    %v1882 = vxor.u32 %v1881, 2147483648
    %v1883 = vmul.f32 %v1882, 1.442695
    %v1884 = vpow.pop %v1883
    %v1885 = vadd.f32 %v1884, 1.0
    %v1886 = vrcp.pop %v1885
    %v1887 = vmul.f32 1.0, %v1886
    %v1888 = vmul.f32 %v1887, %v1878
    %v1889 = vadd.f32 %v350, %v1888
    %v1890 = vtanh.pop %v1889
    %v1891 = vmul.f32 %v874, %v1890
    %v1892 = vmul.f32 %v882, %v1737
    %v1893 = vadd.f32 %v1891, %v1892
    %v1895 = vsel %vm113, %v1893, 0
    %1897 = vmatprep.subr.mxu0 0.0
    %1898 = vmatpush1.msra.mxu0 %v58
    %1899 = vmatprep.subr.mxu0 0.0
    %1900 = vmatpush1.msra.mxu0 %v59
    %1901 = vmatprep.subr.mxu0 0.0
    %1902 = vmatpush1.msra.mxu0 %v60
    %1903 = vmatprep.subr.mxu0 0.0
    %1904 = vmatpush1.msra.mxu0 %v61
    %1905 = vmatprep.subr.mxu0 0.0
    %1906 = vmatpush1.msra.mxu0 0.0
    %1907 = vmatprep.subr.mxu0 0.0
    %1908 = vmatpush1.msra.mxu0 0.0
    %1909 = vmatprep.subr.mxu0 0.0
    %1910 = vmatpush1.msra.mxu0 0.0
    %1911 = vmatprep.subr.mxu0 0.0
    %1912 = vmatpush1.msra.mxu0 0.0
    %1913 = vmatprep.subr.mxu0 0.0
    %1914 = vmatpush1.msra.mxu0 0.0
    %1915 = vmatprep.subr.mxu0 0.0
    %1916 = vmatpush1.msra.mxu0 0.0
    %1917 = vmatprep.subr.mxu0 0.0
    %1918 = vmatpush1.msra.mxu0 0.0
    %1919 = vmatprep.subr.mxu0 0.0
    %1920 = vmatpush1.msra.mxu0 0.0
    %1921 = vmatprep.subr.mxu0 0.0
    %1922 = vmatpush1.msra.mxu0 0.0
    %1923 = vmatprep.subr.mxu0 0.0
    %1924 = vmatpush1.msra.mxu0 0.0
    %1925 = vmatprep.subr.mxu0 0.0
    %1926 = vmatpush1.msra.mxu0 0.0
    %1927 = vmatprep.subr.mxu0 0.0
    %1928 = vmatpush1.msra.mxu0 0.0
    %1929 = vmatprep.subr.mxu0 0.0
    %1930 = vmatpush1.msra.mxu0 0.0
    %1931 = vmatprep.subr.mxu0 0.0
    %1932 = vmatpush1.msra.mxu0 0.0
    %1933 = vmatprep.subr.mxu0 0.0
    %1934 = vmatpush1.msra.mxu0 0.0
    %1935 = vmatprep.subr.mxu0 0.0
    %1936 = vmatpush1.msra.mxu0 0.0
    %1937 = vmatprep.subr.mxu0 0.0
    %1938 = vmatpush1.msra.mxu0 0.0
    %1939 = vmatprep.subr.mxu0 0.0
    %1940 = vmatpush1.msra.mxu0 0.0
    %1941 = vmatprep.subr.mxu0 0.0
    %1942 = vmatpush1.msra.mxu0 0.0
    %1943 = vmatprep.subr.mxu0 0.0
    %1944 = vmatpush1.msra.mxu0 0.0
    %1945 = vmatprep.subr.mxu0 0.0
    %1946 = vmatpush1.msra.mxu0 0.0
    %1947 = vmatprep.subr.mxu0 0.0
    %1948 = vmatpush1.msra.mxu0 0.0
    %1949 = vmatprep.subr.mxu0 0.0
    %1950 = vmatpush1.msra.mxu0 0.0
    %1951 = vmatprep.subr.mxu0 0.0
    %1952 = vmatpush1.msra.mxu0 0.0
    %1953 = vmatprep.subr.mxu0 0.0
    %1954 = vmatpush1.msra.mxu0 0.0
    %1955 = vmatprep.subr.mxu0 0.0
    %1956 = vmatpush1.msra.mxu0 0.0
    %1957 = vmatprep.subr.mxu0 0.0
    %1958 = vmatpush1.msra.mxu0 0.0
    %1959 = vmatprep.subr.mxu0 0.0
    %1960 = vmatpush1.msra.mxu0 0.0
    %1961 = vmatprep.mubr.f32.mxu0 0.0
    %1962 = vmatmul.mubr.f32.gmra.mrb[0].mxu0 %v1895
    %v1963 = vpop.f32.mrb[0].mxu0
    %v1964 = vadd.f32 0.0, %v1963
    %v1965 = vpop.f32.mrb[0].mxu0
    %1966 = vdwg.mxu0
    %1967 = vmatprep.subr.mxu0 0.0
    %1968 = vmatpush1.msra.mxu0 %v62
    %1969 = vmatprep.subr.mxu0 0.0
    %1970 = vmatpush1.msra.mxu0 %v63
    %1971 = vmatprep.subr.mxu0 0.0
    %1972 = vmatpush1.msra.mxu0 %v64
    %1973 = vmatprep.subr.mxu0 0.0
    %1974 = vmatpush1.msra.mxu0 %v65
    %1975 = vmatprep.subr.mxu0 0.0
    %1976 = vmatpush1.msra.mxu0 0.0
    %1977 = vmatprep.subr.mxu0 0.0
    %1978 = vmatpush1.msra.mxu0 0.0
    %1979 = vmatprep.subr.mxu0 0.0
    %1980 = vmatpush1.msra.mxu0 0.0
    %1981 = vmatprep.subr.mxu0 0.0
    %1982 = vmatpush1.msra.mxu0 0.0
    %1983 = vmatprep.subr.mxu0 0.0
    %1984 = vmatpush1.msra.mxu0 0.0
    %1985 = vmatprep.subr.mxu0 0.0
    %1986 = vmatpush1.msra.mxu0 0.0
    %1987 = vmatprep.subr.mxu0 0.0
    %1988 = vmatpush1.msra.mxu0 0.0
    %1989 = vmatprep.subr.mxu0 0.0
    %1990 = vmatpush1.msra.mxu0 0.0
    %1991 = vmatprep.subr.mxu0 0.0
    %1992 = vmatpush1.msra.mxu0 0.0
    %1993 = vmatprep.subr.mxu0 0.0
    %1994 = vmatpush1.msra.mxu0 0.0
    %1995 = vmatprep.subr.mxu0 0.0
    %1996 = vmatpush1.msra.mxu0 0.0
    %1997 = vmatprep.subr.mxu0 0.0
    %1998 = vmatpush1.msra.mxu0 0.0
    %1999 = vmatprep.subr.mxu0 0.0
    %2000 = vmatpush1.msra.mxu0 0.0
    %2001 = vmatprep.subr.mxu0 0.0
    %2002 = vmatpush1.msra.mxu0 0.0
    %2003 = vmatprep.subr.mxu0 0.0
    %2004 = vmatpush1.msra.mxu0 0.0
    %2005 = vmatprep.subr.mxu0 0.0
    %2006 = vmatpush1.msra.mxu0 0.0
    %2007 = vmatprep.subr.mxu0 0.0
    %2008 = vmatpush1.msra.mxu0 0.0
    %2009 = vmatprep.subr.mxu0 0.0
    %2010 = vmatpush1.msra.mxu0 0.0
    %2011 = vmatprep.subr.mxu0 0.0
    %2012 = vmatpush1.msra.mxu0 0.0
    %2013 = vmatprep.subr.mxu0 0.0
    %2014 = vmatpush1.msra.mxu0 0.0
    %2015 = vmatprep.subr.mxu0 0.0
    %2016 = vmatpush1.msra.mxu0 0.0
    %2017 = vmatprep.subr.mxu0 0.0
    %2018 = vmatpush1.msra.mxu0 0.0
    %2019 = vmatprep.subr.mxu0 0.0
    %2020 = vmatpush1.msra.mxu0 0.0
    %2021 = vmatprep.subr.mxu0 0.0
    %2022 = vmatpush1.msra.mxu0 0.0
    %2023 = vmatprep.subr.mxu0 0.0
    %2024 = vmatpush1.msra.mxu0 0.0
    %2025 = vmatprep.subr.mxu0 0.0
    %2026 = vmatpush1.msra.mxu0 0.0
    %2027 = vmatprep.subr.mxu0 0.0
    %2028 = vmatpush1.msra.mxu0 0.0
    %2029 = vmatprep.subr.mxu0 0.0
    %2030 = vmatpush1.msra.mxu0 0.0
    %2031 = vmatprep.mubr.f32.mxu0 0.0
    %2032 = vmatmul.mubr.f32.gmra.mrb[0].mxu0 %v1895
    %v2033 = vpop.f32.mrb[0].mxu0
    %v2034 = vadd.f32 0.0, %v2033
    %v2035 = vpop.f32.mrb[0].mxu0
    %2036 = vdwg.mxu0
    %v2037 = vadd.f32 %v226, %v1964
    %v2038 = vxor.u32 %v2037, 2147483648
    %v2039 = vmul.f32 %v2038, 1.442695
    %v2040 = vpow.pop %v2039
    %v2041 = vadd.f32 %v2040, 1.0
    %v2042 = vrcp.pop %v2041
    %v2043 = vmul.f32 1.0, %v2042
    %v2044 = vmul.f32 %v2043, %v2034
    %v2045 = vadd.f32 %v349, %v2044
    %v2046 = vtanh.pop %v2045
    %v2047 = vmul.f32 %v875, %v2046
    %v2048 = vmul.f32 %v883, %v1893
    %v2049 = vadd.f32 %v2047, %v2048
    %v2051 = vsel %vm113, %v2049, 0
    %2053 = vmatprep.subr.mxu0 0.0
    %2054 = vmatpush1.msra.mxu0 %v58
    %2055 = vmatprep.subr.mxu0 0.0
    %2056 = vmatpush1.msra.mxu0 %v59
    %2057 = vmatprep.subr.mxu0 0.0
    %2058 = vmatpush1.msra.mxu0 %v60
    %2059 = vmatprep.subr.mxu0 0.0
    %2060 = vmatpush1.msra.mxu0 %v61
    %2061 = vmatprep.subr.mxu0 0.0
    %2062 = vmatpush1.msra.mxu0 0.0
    %2063 = vmatprep.subr.mxu0 0.0
    %2064 = vmatpush1.msra.mxu0 0.0
    %2065 = vmatprep.subr.mxu0 0.0
    %2066 = vmatpush1.msra.mxu0 0.0
    %2067 = vmatprep.subr.mxu0 0.0
    %2068 = vmatpush1.msra.mxu0 0.0
    %2069 = vmatprep.subr.mxu0 0.0
    %2070 = vmatpush1.msra.mxu0 0.0
    %2071 = vmatprep.subr.mxu0 0.0
    %2072 = vmatpush1.msra.mxu0 0.0
    %2073 = vmatprep.subr.mxu0 0.0
    %2074 = vmatpush1.msra.mxu0 0.0
    %2075 = vmatprep.subr.mxu0 0.0
    %2076 = vmatpush1.msra.mxu0 0.0
    %2077 = vmatprep.subr.mxu0 0.0
    %2078 = vmatpush1.msra.mxu0 0.0
    %2079 = vmatprep.subr.mxu0 0.0
    %2080 = vmatpush1.msra.mxu0 0.0
    %2081 = vmatprep.subr.mxu0 0.0
    %2082 = vmatpush1.msra.mxu0 0.0
    %2083 = vmatprep.subr.mxu0 0.0
    %2084 = vmatpush1.msra.mxu0 0.0
    %2085 = vmatprep.subr.mxu0 0.0
    %2086 = vmatpush1.msra.mxu0 0.0
    %2087 = vmatprep.subr.mxu0 0.0
    %2088 = vmatpush1.msra.mxu0 0.0
    %2089 = vmatprep.subr.mxu0 0.0
    %2090 = vmatpush1.msra.mxu0 0.0
    %2091 = vmatprep.subr.mxu0 0.0
    %2092 = vmatpush1.msra.mxu0 0.0
    %2093 = vmatprep.subr.mxu0 0.0
    %2094 = vmatpush1.msra.mxu0 0.0
    %2095 = vmatprep.subr.mxu0 0.0
    %2096 = vmatpush1.msra.mxu0 0.0
    %2097 = vmatprep.subr.mxu0 0.0
    %2098 = vmatpush1.msra.mxu0 0.0
    %2099 = vmatprep.subr.mxu0 0.0
    %2100 = vmatpush1.msra.mxu0 0.0
    %2101 = vmatprep.subr.mxu0 0.0
    %2102 = vmatpush1.msra.mxu0 0.0
    %2103 = vmatprep.subr.mxu0 0.0
    %2104 = vmatpush1.msra.mxu0 0.0
    %2105 = vmatprep.subr.mxu0 0.0
    %2106 = vmatpush1.msra.mxu0 0.0
    %2107 = vmatprep.subr.mxu0 0.0
    %2108 = vmatpush1.msra.mxu0 0.0
    %2109 = vmatprep.subr.mxu0 0.0
    %2110 = vmatpush1.msra.mxu0 0.0
    %2111 = vmatprep.subr.mxu0 0.0
    %2112 = vmatpush1.msra.mxu0 0.0
    %2113 = vmatprep.subr.mxu0 0.0
    %2114 = vmatpush1.msra.mxu0 0.0
    %2115 = vmatprep.subr.mxu0 0.0
    %2116 = vmatpush1.msra.mxu0 0.0
    %2117 = vmatprep.mubr.f32.mxu0 0.0
    %2118 = vmatmul.mubr.f32.gmra.mrb[0].mxu0 %v2051
    %v2119 = vpop.f32.mrb[0].mxu0
    %v2120 = vadd.f32 0.0, %v2119
    %v2121 = vpop.f32.mrb[0].mxu0
    %2122 = vdwg.mxu0
    %2123 = vmatprep.subr.mxu0 0.0
    %2124 = vmatpush1.msra.mxu0 %v62
    %2125 = vmatprep.subr.mxu0 0.0
    %2126 = vmatpush1.msra.mxu0 %v63
    %2127 = vmatprep.subr.mxu0 0.0
    %2128 = vmatpush1.msra.mxu0 %v64
    %2129 = vmatprep.subr.mxu0 0.0
    %2130 = vmatpush1.msra.mxu0 %v65
    %2131 = vmatprep.subr.mxu0 0.0
    %2132 = vmatpush1.msra.mxu0 0.0
    %2133 = vmatprep.subr.mxu0 0.0
    %2134 = vmatpush1.msra.mxu0 0.0
    %2135 = vmatprep.subr.mxu0 0.0
    %2136 = vmatpush1.msra.mxu0 0.0
    %2137 = vmatprep.subr.mxu0 0.0
    %2138 = vmatpush1.msra.mxu0 0.0
    %2139 = vmatprep.subr.mxu0 0.0
    %2140 = vmatpush1.msra.mxu0 0.0
    %2141 = vmatprep.subr.mxu0 0.0
    %2142 = vmatpush1.msra.mxu0 0.0
    %2143 = vmatprep.subr.mxu0 0.0
    %2144 = vmatpush1.msra.mxu0 0.0
    %2145 = vmatprep.subr.mxu0 0.0
    %2146 = vmatpush1.msra.mxu0 0.0
    %2147 = vmatprep.subr.mxu0 0.0
    %2148 = vmatpush1.msra.mxu0 0.0
    %2149 = vmatprep.subr.mxu0 0.0
    %2150 = vmatpush1.msra.mxu0 0.0
    %2151 = vmatprep.subr.mxu0 0.0
    %2152 = vmatpush1.msra.mxu0 0.0
    %2153 = vmatprep.subr.mxu0 0.0
    %2154 = vmatpush1.msra.mxu0 0.0
    %2155 = vmatprep.subr.mxu0 0.0
    %2156 = vmatpush1.msra.mxu0 0.0
    %2157 = vmatprep.subr.mxu0 0.0
    %2158 = vmatpush1.msra.mxu0 0.0
    %2159 = vmatprep.subr.mxu0 0.0
    %2160 = vmatpush1.msra.mxu0 0.0
    %2161 = vmatprep.subr.mxu0 0.0
    %2162 = vmatpush1.msra.mxu0 0.0
    %2163 = vmatprep.subr.mxu0 0.0
    %2164 = vmatpush1.msra.mxu0 0.0
    %2165 = vmatprep.subr.mxu0 0.0
    %2166 = vmatpush1.msra.mxu0 0.0
    %2167 = vmatprep.subr.mxu0 0.0
    %2168 = vmatpush1.msra.mxu0 0.0
    %2169 = vmatprep.subr.mxu0 0.0
    %2170 = vmatpush1.msra.mxu0 0.0
    %2171 = vmatprep.subr.mxu0 0.0
    %2172 = vmatpush1.msra.mxu0 0.0
    %2173 = vmatprep.subr.mxu0 0.0
    %2174 = vmatpush1.msra.mxu0 0.0
    %2175 = vmatprep.subr.mxu0 0.0
    %2176 = vmatpush1.msra.mxu0 0.0
    %2177 = vmatprep.subr.mxu0 0.0
    %2178 = vmatpush1.msra.mxu0 0.0
    %2179 = vmatprep.subr.mxu0 0.0
    %2180 = vmatpush1.msra.mxu0 0.0
    %2181 = vmatprep.subr.mxu0 0.0
    %2182 = vmatpush1.msra.mxu0 0.0
    %2183 = vmatprep.subr.mxu0 0.0
    %2184 = vmatpush1.msra.mxu0 0.0
    %2185 = vmatprep.subr.mxu0 0.0
    %2186 = vmatpush1.msra.mxu0 0.0
    %2187 = vmatprep.mubr.f32.mxu0 0.0
    %2188 = vmatmul.mubr.f32.gmra.mrb[0].mxu0 %v2051
    %v2189 = vpop.f32.mrb[0].mxu0
    %v2190 = vadd.f32 0.0, %v2189
    %v2191 = vpop.f32.mrb[0].mxu0
    %2192 = vdwg.mxu0
    %v2193 = vadd.f32 %v228, %v2120
    %v2194 = vxor.u32 %v2193, 2147483648
    %v2195 = vmul.f32 %v2194, 1.442695
    %v2196 = vpow.pop %v2195
    %v2197 = vadd.f32 %v2196, 1.0
    %v2198 = vrcp.pop %v2197
    %v2199 = vmul.f32 1.0, %v2198
    %v2200 = vmul.f32 %v2199, %v2190
    %v2201 = vadd.f32 %v351, %v2200
    %v2202 = vtanh.pop %v2201
    %v2203 = vmul.f32 %v876, %v2202
    %v2204 = vmul.f32 %v884, %v2049
    %v2205 = vadd.f32 %v2203, %v2204
    %v2206 = vadd.f32 %v458, %v955
    %v2208 = vsel %vm113, %v2205, 0
    %2210 = vmatprep.subr.mxu0 0.0
    %2211 = vmatpush1.msra.mxu0 %v42
    %2212 = vmatprep.subr.mxu0 0.0
    %2213 = vmatpush1.msra.mxu0 %v43
    %2214 = vmatprep.subr.mxu0 0.0
    %2215 = vmatpush1.msra.mxu0 %v44
    %2216 = vmatprep.subr.mxu0 0.0
    %2217 = vmatpush1.msra.mxu0 %v45
    %2218 = vmatprep.subr.mxu0 0.0
    %2219 = vmatpush1.msra.mxu0 0.0
    %2220 = vmatprep.subr.mxu0 0.0
    %2221 = vmatpush1.msra.mxu0 0.0
    %2222 = vmatprep.subr.mxu0 0.0
    %2223 = vmatpush1.msra.mxu0 0.0
    %2224 = vmatprep.subr.mxu0 0.0
    %2225 = vmatpush1.msra.mxu0 0.0
    %2226 = vmatprep.subr.mxu0 0.0
    %2227 = vmatpush1.msra.mxu0 0.0
    %2228 = vmatprep.subr.mxu0 0.0
    %2229 = vmatpush1.msra.mxu0 0.0
    %2230 = vmatprep.subr.mxu0 0.0
    %2231 = vmatpush1.msra.mxu0 0.0
    %2232 = vmatprep.subr.mxu0 0.0
    %2233 = vmatpush1.msra.mxu0 0.0
    %2234 = vmatprep.subr.mxu0 0.0
    %2235 = vmatpush1.msra.mxu0 0.0
    %2236 = vmatprep.subr.mxu0 0.0
    %2237 = vmatpush1.msra.mxu0 0.0
    %2238 = vmatprep.subr.mxu0 0.0
    %2239 = vmatpush1.msra.mxu0 0.0
    %2240 = vmatprep.subr.mxu0 0.0
    %2241 = vmatpush1.msra.mxu0 0.0
    %2242 = vmatprep.subr.mxu0 0.0
    %2243 = vmatpush1.msra.mxu0 0.0
    %2244 = vmatprep.subr.mxu0 0.0
    %2245 = vmatpush1.msra.mxu0 0.0
    %2246 = vmatprep.subr.mxu0 0.0
    %2247 = vmatpush1.msra.mxu0 0.0
    %2248 = vmatprep.subr.mxu0 0.0
    %2249 = vmatpush1.msra.mxu0 0.0
    %2250 = vmatprep.subr.mxu0 0.0
    %2251 = vmatpush1.msra.mxu0 0.0
    %2252 = vmatprep.subr.mxu0 0.0
    %2253 = vmatpush1.msra.mxu0 0.0
    %2254 = vmatprep.subr.mxu0 0.0
    %2255 = vmatpush1.msra.mxu0 0.0
    %2256 = vmatprep.subr.mxu0 0.0
    %2257 = vmatpush1.msra.mxu0 0.0
    %2258 = vmatprep.subr.mxu0 0.0
    %2259 = vmatpush1.msra.mxu0 0.0
    %2260 = vmatprep.subr.mxu0 0.0
    %2261 = vmatpush1.msra.mxu0 0.0
    %2262 = vmatprep.subr.mxu0 0.0
    %2263 = vmatpush1.msra.mxu0 0.0
    %2264 = vmatprep.subr.mxu0 0.0
    %2265 = vmatpush1.msra.mxu0 0.0
    %2266 = vmatprep.subr.mxu0 0.0
    %2267 = vmatpush1.msra.mxu0 0.0
    %2268 = vmatprep.subr.mxu0 0.0
    %2269 = vmatpush1.msra.mxu0 0.0
    %2270 = vmatprep.subr.mxu0 0.0
    %2271 = vmatpush1.msra.mxu0 0.0
    %2272 = vmatprep.subr.mxu0 0.0
    %2273 = vmatpush1.msra.mxu0 0.0
    %2274 = vmatprep.mubr.f32.mxu0 0.0
    %2275 = vmatmul.mubr.f32.gmra.mrb[0].mxu0 %v2208
    %v2276 = vpop.f32.mrb[0].mxu0
    %v2277 = vadd.f32 0.0, %v2276
    %v2278 = vpop.f32.mrb[0].mxu0
    %2279 = vdwg.mxu0
    %v2280 = vadd.f32 %v2206, %v2277
    %v2281 = vmax.f32 %v2280, 0.0
    %2282 = vst.msk [vmem:[#allocation2] sm:$0x3] %vm788, %v2281
    // Predicated region
    $region10: #{episodic_memory_forward.1} parent=1 // pred_check
      _
    $region11: #{episodic_memory_forward.1} parent=1 // pred_check_branch
      %2284 = sbr.rel (0) target = $region13
    $region12: #{episodic_memory_forward.1} parent=1 // pred_region
      %s2286 = ssub.s32 32, 32
      %2287 = vsyncadd [#allocation3], %s2286
      %s2289 = sshll.u32 [#allocation2], 4
      %s2290 = int_to_ptr.vmem [resolvable:$true] %s2289
      %2292 = dma.vmem_to_hbm [thread:$0]  %s2290, 32, %s2, [#allocation3]
    $region13: #{episodic_memory_forward.1} parent=1 // pred_fallthru
      _
    // Predicated region
    $region14: #{episodic_memory_forward.1} parent=1 // pred_check
      _
    $region15: #{episodic_memory_forward.1} parent=1 // pred_check_branch
      %2294 = sbr.rel (0) target = $region17
    $region16: #{episodic_memory_forward.1} parent=1 // pred_region
      %2295 = dma.done [#allocation3], 32
    $region17: #{episodic_memory_forward.1} parent=1 // pred_fallthru
      _
    %2296 = vsyncpa [#allocation3], 1

</llo_original>
